<compile_context>
chip_gen: v7x
topology: tpu7x:2x2x1
jax: 0.10.0
libtpu: 0.0.40
codegen_flags: <defaults>
</compile_context>

<pallas_src>
import jax
import jax.numpy as jnp
from jax.experimental import pallas as pl
from jax.experimental.pallas import tpu as pltpu

BC = 8  # sequences per grid step == f32 sublane tile


def _round_up(n, m):
    return ((n + m - 1) // m) * m


def gru_fc_kernel(seq_ref, wih_ref, whh_ref, bih_ref, bhh_ref,
                  fcw_ref, fcb_ref, out_ref):
    """GRU over T steps for a chunk of BC sequences + final linear head.

    seq_ref : [T*BC, D]  f32  (time-major inside the chunk: row = t*BC + b)
    wih_ref : [D,  3*Hp] bf16 (gate order r|z|n, each gate in its own 128-lane block)
    whh_ref : [Hk, 3*Hp] bf16 (contraction dim shrunk to Hk)
    bih/bhh : [1, 3*Hp]  f32
    fcw_ref : [Hk, Ap]   f32
    fcb_ref : [1, Ap]    f32
    out_ref : [BC, Ap]   f32
    """
    TB = seq_ref.shape[0]
    T = TB // BC
    Hk = whh_ref.shape[0]
    Hp = whh_ref.shape[1] // 3

    # All input projections for the whole chunk in one MXU matmul: [T*BC, 3*Hp].
    gx_all = jnp.dot(seq_ref[...].astype(jnp.bfloat16), wih_ref[...],
                     preferred_element_type=jnp.float32) + bih_ref[...]

    # Hoisted recurrent weights: bf16 [Hk, 3*Hp] = 24 KiB (~6 vregs), no spill risk.
    whh = whh_ref[...]
    bhh = bhh_ref[...]

    # Hidden state lives in vregs; padded lanes (>= H) stay exactly 0.
    h = jnp.zeros((BC, Hp), jnp.float32)

    # Fully unrolled static time loop (T is compile-time known -> static slices).
    # TODO(synk): on v7x, whh could be held resident in the MXU across the loop via
    # pltpu.matmul_push_rhs / matmul_acc_lhs / matmul_pop; kept portable here.
    for t in range(T):
        gh = jnp.dot(h[:, :Hk].astype(jnp.bfloat16), whh,
                     preferred_element_type=jnp.float32) + bhh          # [BC, 3Hp]
        gx = gx_all[t * BC:(t + 1) * BC, :]                              # [BC, 3Hp]

        # PyTorch nn.GRU gate order r|z|n; fuse r and z into one sigmoid call.
        rz = jax.nn.sigmoid(gx[:, :2 * Hp] + gh[:, :2 * Hp])
        r = rz[:, :Hp]
        z = rz[:, Hp:]
        n = jnp.tanh(gx[:, 2 * Hp:] + r * gh[:, 2 * Hp:])
        h = (1.0 - z) * n + z * h

    # action_logits = h_T @ fc_W^T + fc_b   (lane-dense [BC, Ap] store)
    out_ref[...] = jnp.dot(h[:, :Hk], fcw_ref[...],
                           preferred_element_type=jnp.float32) + fcb_ref[...]


def rnn_forward_batched(seqs, params, action_dim):
    """seqs: [B, T, D] f32 -> [B, action_dim] f32 (B sequences per call)."""
    B, T, D = seqs.shape
    Hk, Ap = params["fc_w_t"].shape
    Hp = params["w_ih_t"].shape[1] // 3

    nchunks = _round_up(B, BC) // BC
    Bp = nchunks * BC
    seqs_p = jnp.zeros((Bp, T, D), jnp.float32).at[:B].set(seqs)
    # chunk-major, time-major within a chunk: [nchunks*T*BC, D]
    packed = (seqs_p.reshape(nchunks, BC, T, D)
                    .transpose(0, 2, 1, 3)
                    .reshape(nchunks * T * BC, D))

    flops = nchunks * (2 * T * BC * D * 3 * Hp
                       + 2 * T * BC * Hk * 3 * Hp
                       + 2 * BC * Hk * Ap)
    transcendentals = nchunks * T * BC * 3 * Hp
    bytes_accessed = (packed.size * 4
                      + params["w_ih_t"].size * 2 + params["w_hh_t"].size * 2
                      + params["b_ih"].size * 4 + params["b_hh"].size * 4
                      + params["fc_w_t"].size * 4 + params["fc_b"].size * 4
                      + Bp * Ap * 4)

    const = lambda b: (0, 0)   # weights: same block every grid step -> stay resident
    out = pl.pallas_call(
        gru_fc_kernel,
        grid=(nchunks,),
        out_shape=jax.ShapeDtypeStruct((Bp, Ap), jnp.float32),
        in_specs=[
            pl.BlockSpec((T * BC, D), lambda b: (b, 0)),
            pl.BlockSpec((D, 3 * Hp), const),
            pl.BlockSpec((Hk, 3 * Hp), const),
            pl.BlockSpec((1, 3 * Hp), const),
            pl.BlockSpec((1, 3 * Hp), const),
            pl.BlockSpec((Hk, Ap), const),
            pl.BlockSpec((1, Ap), const),
        ],
        out_specs=pl.BlockSpec((BC, Ap), lambda b: (b, 0)),
        compiler_params=pltpu.CompilerParams(dimension_semantics=("parallel",)),
        cost_estimate=pl.CostEstimate(flops=flops,
                                      transcendentals=transcendentals,
                                      bytes_accessed=bytes_accessed),
    )(packed, params["w_ih_t"], params["w_hh_t"], params["b_ih"],
      params["b_hh"], params["fc_w_t"], params["fc_b"])
    return out[:B, :action_dim]


def rnn_forward(seq, params, action_dim):
    """Single-sequence forward matching the PyTorch module: [T, D] -> [action_dim]."""
    return rnn_forward_batched(seq[None], params, action_dim)[0]


def init_raw_params(key, state_dim, hidden_dim, action_dim):
    """Raw torch-shaped parameters (nn.GRU / nn.Linear default uniform init)."""
    ks = jax.random.split(key, 6)
    bound = 1.0 / jnp.sqrt(hidden_dim)

    def u(k, shape):
        return jax.random.uniform(k, shape, jnp.float32, -bound, bound)

    return {
        "w_ih": u(ks[0], (3 * hidden_dim, state_dim)),   # torch weight_ih_l0
        "w_hh": u(ks[1], (3 * hidden_dim, hidden_dim)),  # torch weight_hh_l0
        "b_ih": u(ks[2], (3 * hidden_dim,)),
        "b_hh": u(ks[3], (3 * hidden_dim,)),
        "fc_w": u(ks[4], (action_dim, hidden_dim)),      # torch Linear.weight
        "fc_b": u(ks[5], (action_dim,)),
    }


def pack_params(raw, state_dim, hidden_dim, action_dim):
    """Transpose + lane-pad each gate to its own 128-lane block (zero pad);
    shrink the W_hh^T contraction dim to Hk and cast MXU weights to bf16."""
    H, D, A = hidden_dim, state_dim, action_dim
    Hp = max(128, _round_up(H, 128))
    Hk = max(16, _round_up(H, 16))     # shrunk K dim of W_hh^T / fc_W^T
    Ap = max(128, _round_up(A, 128))

    w_ih_t = jnp.zeros((D, 3 * Hp), jnp.float32)
    w_hh_t = jnp.zeros((Hk, 3 * Hp), jnp.float32)
    b_ih = jnp.zeros((1, 3 * Hp), jnp.float32)
    b_hh = jnp.zeros((1, 3 * Hp), jnp.float32)
    for g in range(3):  # r | z | n
        w_ih_t = w_ih_t.at[:, g * Hp:g * Hp + H].set(raw["w_ih"][g * H:(g + 1) * H, :].T)
        w_hh_t = w_hh_t.at[:H, g * Hp:g * Hp + H].set(raw["w_hh"][g * H:(g + 1) * H, :].T)
        b_ih = b_ih.at[0, g * Hp:g * Hp + H].set(raw["b_ih"][g * H:(g + 1) * H])
        b_hh = b_hh.at[0, g * Hp:g * Hp + H].set(raw["b_hh"][g * H:(g + 1) * H])

    fc_w_t = jnp.zeros((Hk, Ap), jnp.float32).at[:H, :A].set(raw["fc_w"].T)
    fc_b = jnp.zeros((1, Ap), jnp.float32).at[0, :A].set(raw["fc_b"])

    return {
        "w_ih_t": w_ih_t.astype(jnp.bfloat16),   # [D, 3*Hp]
        "w_hh_t": w_hh_t.astype(jnp.bfloat16),   # [Hk, 3*Hp]
        "b_ih": b_ih,                            # [1, 3*Hp]
        "b_hh": b_hh,                            # [1, 3*Hp]
        "fc_w_t": fc_w_t,                        # [Hk, Ap]
        "fc_b": fc_b,                            # [1, Ap]
    }


def rnn_reference(seq, raw, hidden_dim):
    """Pure-JAX f32 reference of the unpadded GRU+FC forward."""
    H = hidden_dim
    gx_all = seq @ raw["w_ih"].T + raw["b_ih"][None, :]
    h = jnp.zeros((1, H), jnp.float32)
    for t in range(seq.shape[0]):
        gx = gx_all[t:t + 1]
        gh = h @ raw["w_hh"].T + raw["b_hh"][None, :]
        r = jax.nn.sigmoid(gx[:, :H] + gh[:, :H])
        z = jax.nn.sigmoid(gx[:, H:2 * H] + gh[:, H:2 * H])
        n = jnp.tanh(gx[:, 2 * H:] + r * gh[:, 2 * H:])
        h = (1.0 - z) * n + z * h
    return (h @ raw["fc_w"].T + raw["fc_b"][None, :])[0]


if __name__ == "__main__":
    seq_len, state_dim, hidden_dim, action_dim = 8, 16, 32, 6
    batch = 16  # -> 2 grid steps of BC=8 sequences (exercises the parallel grid)

    key = jax.random.PRNGKey(0)
    k_seq, k_par = jax.random.split(key)
    seqs = jax.random.normal(k_seq, (batch, seq_len, state_dim), jnp.float32)

    raw = init_raw_params(k_par, state_dim, hidden_dim, action_dim)
    params = pack_params(raw, state_dim, hidden_dim, action_dim)

    # Batched path (the perf-relevant one).
    logits_b = jax.block_until_ready(rnn_forward_batched(seqs, params, action_dim))
    assert logits_b.shape == (batch, action_dim), logits_b.shape

    # Single-sequence path matching the PyTorch module's forward().
    logits_1 = jax.block_until_ready(rnn_forward(seqs[0], params, action_dim))
    assert logits_1.shape == (action_dim,), logits_1.shape

    # bf16 MXU operands -> relaxed tolerance vs. the pure-f32 reference.
    ref_b = jnp.stack([rnn_reference(seqs[b], raw, hidden_dim) for b in range(batch)])
    assert jnp.allclose(logits_b, ref_b, atol=2e-2, rtol=2e-2), (logits_b, ref_b)
    assert jnp.allclose(logits_1, ref_b[0], atol=2e-2, rtol=2e-2), (logits_1, ref_b[0])
    print("KERNEL_OK")
</pallas_src>

<mosaic_0001>
module attributes {stable_mosaic.version = 11 : i64} {
  func.func @gru_fc_kernel(%arg0: i32, %arg1: memref<64x16xf32, #tpu.memory_space<vmem>>, %arg2: memref<16x384xbf16, #tpu.memory_space<vmem>>, %arg3: memref<32x384xbf16, #tpu.memory_space<vmem>>, %arg4: memref<1x384xf32, #tpu.memory_space<vmem>>, %arg5: memref<1x384xf32, #tpu.memory_space<vmem>>, %arg6: memref<32x128xf32, #tpu.memory_space<vmem>>, %arg7: memref<1x128xf32, #tpu.memory_space<vmem>>, %arg8: memref<8x128xf32, #tpu.memory_space<vmem>>) attributes {dimension_semantics = [#tpu.dimension_semantics<parallel>], iteration_bounds = array<i64: 2>, scalar_prefetch = 0 : i64, scratch_operands = 0 : i64, tpu.core_type = #tpu.core_type<tc>, window_params = [{transform_indices = @transform_0, window_bounds = array<i64: 64, 16>}, {pipeline_mode = #tpu.pipeline_mode<synchronous>, transform_indices = @transform_1, window_bounds = array<i64: 16, 384>}, {pipeline_mode = #tpu.pipeline_mode<synchronous>, transform_indices = @transform_2, window_bounds = array<i64: 32, 384>}, {pipeline_mode = #tpu.pipeline_mode<synchronous>, transform_indices = @transform_3, window_bounds = array<i64: 1, 384>}, {pipeline_mode = #tpu.pipeline_mode<synchronous>, transform_indices = @transform_4, window_bounds = array<i64: 1, 384>}, {pipeline_mode = #tpu.pipeline_mode<synchronous>, transform_indices = @transform_5, window_bounds = array<i64: 32, 128>}, {pipeline_mode = #tpu.pipeline_mode<synchronous>, transform_indices = @transform_6, window_bounds = array<i64: 1, 128>}, {transform_indices = @transform_7, window_bounds = array<i64: 8, 128>}]} {
    %c0 = arith.constant 0 : index
    %c0_0 = arith.constant 0 : index
    %0 = vector.load %arg1[%c0, %c0_0] : memref<64x16xf32, #tpu.memory_space<vmem>>, vector<64x16xf32>
    %1 = arith.truncf %0 : vector<64x16xf32> to vector<64x16xbf16>
    %c0_1 = arith.constant 0 : index
    %c0_2 = arith.constant 0 : index
    %2 = vector.load %arg2[%c0_1, %c0_2] : memref<16x384xbf16, #tpu.memory_space<vmem>>, vector<16x384xbf16>
    %cst = arith.constant dense<0.000000e+00> : vector<64x384xf32>
    %3 = tpu.matmul %1, %2, %cst {dimension_numbers = #tpu.dot_dimension_numbers<[1], [0], [0], [1], [0, 0, 1, 1], [], []>} : vector<64x16xbf16>, vector<16x384xbf16>, vector<64x384xf32> -> vector<64x384xf32>
    %c0_3 = arith.constant 0 : index
    %c0_4 = arith.constant 0 : index
    %4 = vector.load %arg4[%c0_3, %c0_4] : memref<1x384xf32, #tpu.memory_space<vmem>>, vector<1x384xf32>
    %5 = vector.broadcast %4 : vector<1x384xf32> to vector<64x384xf32>
    %6 = arith.addf %3, %5 : vector<64x384xf32>
    %c0_5 = arith.constant 0 : index
    %c0_6 = arith.constant 0 : index
    %7 = vector.load %arg3[%c0_5, %c0_6] : memref<32x384xbf16, #tpu.memory_space<vmem>>, vector<32x384xbf16>
    %c0_7 = arith.constant 0 : index
    %c0_8 = arith.constant 0 : index
    %8 = vector.load %arg5[%c0_7, %c0_8] : memref<1x384xf32, #tpu.memory_space<vmem>>, vector<1x384xf32>
    %cst_9 = arith.constant 0.000000e+00 : f32
    %9 = vector.broadcast %cst_9 : f32 to vector<8x128xf32>
    %10 = vector.extract_strided_slice %9 {offsets = [0, 0], sizes = [8, 32], strides = [1, 1]} : vector<8x128xf32> to vector<8x32xf32>
    %11 = arith.truncf %10 : vector<8x32xf32> to vector<8x32xbf16>
    %cst_10 = arith.constant dense<0.000000e+00> : vector<8x384xf32>
    %12 = tpu.matmul %11, %7, %cst_10 {dimension_numbers = #tpu.dot_dimension_numbers<[1], [0], [0], [1], [0, 0, 1, 1], [], []>} : vector<8x32xbf16>, vector<32x384xbf16>, vector<8x384xf32> -> vector<8x384xf32>
    %13 = vector.broadcast %8 : vector<1x384xf32> to vector<8x384xf32>
    %14 = arith.addf %12, %13 : vector<8x384xf32>
    %15 = vector.extract_strided_slice %6 {offsets = [0, 0], sizes = [8, 384], strides = [1, 1]} : vector<64x384xf32> to vector<8x384xf32>
    %16 = vector.extract_strided_slice %15 {offsets = [0, 0], sizes = [8, 256], strides = [1, 1]} : vector<8x384xf32> to vector<8x256xf32>
    %17 = vector.extract_strided_slice %14 {offsets = [0, 0], sizes = [8, 256], strides = [1, 1]} : vector<8x384xf32> to vector<8x256xf32>
    %18 = arith.addf %16, %17 : vector<8x256xf32>
    %19 = arith.negf %18 : vector<8x256xf32>
    %20 = math.exp %19 : vector<8x256xf32>
    %cst_11 = arith.constant 1.000000e+00 : f32
    %21 = vector.broadcast %cst_11 : f32 to vector<8x256xf32>
    %22 = arith.addf %21, %20 : vector<8x256xf32>
    %23 = arith.divf %21, %22 : vector<8x256xf32>
    %24 = vector.extract_strided_slice %23 {offsets = [0, 0], sizes = [8, 128], strides = [1, 1]} : vector<8x256xf32> to vector<8x128xf32>
    %25 = vector.extract_strided_slice %23 {offsets = [0, 128], sizes = [8, 128], strides = [1, 1]} : vector<8x256xf32> to vector<8x128xf32>
    %26 = vector.extract_strided_slice %15 {offsets = [0, 256], sizes = [8, 128], strides = [1, 1]} : vector<8x384xf32> to vector<8x128xf32>
    %27 = vector.extract_strided_slice %14 {offsets = [0, 256], sizes = [8, 128], strides = [1, 1]} : vector<8x384xf32> to vector<8x128xf32>
    %28 = arith.mulf %24, %27 : vector<8x128xf32>
    %29 = arith.addf %26, %28 : vector<8x128xf32>
    %30 = math.tanh %29 : vector<8x128xf32>
    %cst_12 = arith.constant 1.000000e+00 : f32
    %31 = vector.broadcast %cst_12 : f32 to vector<8x128xf32>
    %32 = arith.subf %31, %25 : vector<8x128xf32>
    %33 = arith.mulf %32, %30 : vector<8x128xf32>
    %34 = arith.mulf %25, %9 : vector<8x128xf32>
    %35 = arith.addf %33, %34 : vector<8x128xf32>
    %36 = vector.extract_strided_slice %35 {offsets = [0, 0], sizes = [8, 32], strides = [1, 1]} : vector<8x128xf32> to vector<8x32xf32>
    %37 = arith.truncf %36 : vector<8x32xf32> to vector<8x32xbf16>
    %cst_13 = arith.constant dense<0.000000e+00> : vector<8x384xf32>
    %38 = tpu.matmul %37, %7, %cst_13 {dimension_numbers = #tpu.dot_dimension_numbers<[1], [0], [0], [1], [0, 0, 1, 1], [], []>} : vector<8x32xbf16>, vector<32x384xbf16>, vector<8x384xf32> -> vector<8x384xf32>
    %39 = vector.broadcast %8 : vector<1x384xf32> to vector<8x384xf32>
    %40 = arith.addf %38, %39 : vector<8x384xf32>
    %41 = vector.extract_strided_slice %6 {offsets = [8, 0], sizes = [8, 384], strides = [1, 1]} : vector<64x384xf32> to vector<8x384xf32>
    %42 = vector.extract_strided_slice %41 {offsets = [0, 0], sizes = [8, 256], strides = [1, 1]} : vector<8x384xf32> to vector<8x256xf32>
    %43 = vector.extract_strided_slice %40 {offsets = [0, 0], sizes = [8, 256], strides = [1, 1]} : vector<8x384xf32> to vector<8x256xf32>
    %44 = arith.addf %42, %43 : vector<8x256xf32>
    %45 = arith.negf %44 : vector<8x256xf32>
    %46 = math.exp %45 : vector<8x256xf32>
    %cst_14 = arith.constant 1.000000e+00 : f32
    %47 = vector.broadcast %cst_14 : f32 to vector<8x256xf32>
    %48 = arith.addf %47, %46 : vector<8x256xf32>
    %49 = arith.divf %47, %48 : vector<8x256xf32>
    %50 = vector.extract_strided_slice %49 {offsets = [0, 0], sizes = [8, 128], strides = [1, 1]} : vector<8x256xf32> to vector<8x128xf32>
    %51 = vector.extract_strided_slice %49 {offsets = [0, 128], sizes = [8, 128], strides = [1, 1]} : vector<8x256xf32> to vector<8x128xf32>
    %52 = vector.extract_strided_slice %41 {offsets = [0, 256], sizes = [8, 128], strides = [1, 1]} : vector<8x384xf32> to vector<8x128xf32>
    %53 = vector.extract_strided_slice %40 {offsets = [0, 256], sizes = [8, 128], strides = [1, 1]} : vector<8x384xf32> to vector<8x128xf32>
    %54 = arith.mulf %50, %53 : vector<8x128xf32>
    %55 = arith.addf %52, %54 : vector<8x128xf32>
    %56 = math.tanh %55 : vector<8x128xf32>
    %cst_15 = arith.constant 1.000000e+00 : f32
    %57 = vector.broadcast %cst_15 : f32 to vector<8x128xf32>
    %58 = arith.subf %57, %51 : vector<8x128xf32>
    %59 = arith.mulf %58, %56 : vector<8x128xf32>
    %60 = arith.mulf %51, %35 : vector<8x128xf32>
    %61 = arith.addf %59, %60 : vector<8x128xf32>
    %62 = vector.extract_strided_slice %61 {offsets = [0, 0], sizes = [8, 32], strides = [1, 1]} : vector<8x128xf32> to vector<8x32xf32>
    %63 = arith.truncf %62 : vector<8x32xf32> to vector<8x32xbf16>
    %cst_16 = arith.constant dense<0.000000e+00> : vector<8x384xf32>
    %64 = tpu.matmul %63, %7, %cst_16 {dimension_numbers = #tpu.dot_dimension_numbers<[1], [0], [0], [1], [0, 0, 1, 1], [], []>} : vector<8x32xbf16>, vector<32x384xbf16>, vector<8x384xf32> -> vector<8x384xf32>
    %65 = vector.broadcast %8 : vector<1x384xf32> to vector<8x384xf32>
    %66 = arith.addf %64, %65 : vector<8x384xf32>
    %67 = vector.extract_strided_slice %6 {offsets = [16, 0], sizes = [8, 384], strides = [1, 1]} : vector<64x384xf32> to vector<8x384xf32>
    %68 = vector.extract_strided_slice %67 {offsets = [0, 0], sizes = [8, 256], strides = [1, 1]} : vector<8x384xf32> to vector<8x256xf32>
    %69 = vector.extract_strided_slice %66 {offsets = [0, 0], sizes = [8, 256], strides = [1, 1]} : vector<8x384xf32> to vector<8x256xf32>
    %70 = arith.addf %68, %69 : vector<8x256xf32>
    %71 = arith.negf %70 : vector<8x256xf32>
    %72 = math.exp %71 : vector<8x256xf32>
    %cst_17 = arith.constant 1.000000e+00 : f32
    %73 = vector.broadcast %cst_17 : f32 to vector<8x256xf32>
    %74 = arith.addf %73, %72 : vector<8x256xf32>
    %75 = arith.divf %73, %74 : vector<8x256xf32>
    %76 = vector.extract_strided_slice %75 {offsets = [0, 0], sizes = [8, 128], strides = [1, 1]} : vector<8x256xf32> to vector<8x128xf32>
    %77 = vector.extract_strided_slice %75 {offsets = [0, 128], sizes = [8, 128], strides = [1, 1]} : vector<8x256xf32> to vector<8x128xf32>
    %78 = vector.extract_strided_slice %67 {offsets = [0, 256], sizes = [8, 128], strides = [1, 1]} : vector<8x384xf32> to vector<8x128xf32>
    %79 = vector.extract_strided_slice %66 {offsets = [0, 256], sizes = [8, 128], strides = [1, 1]} : vector<8x384xf32> to vector<8x128xf32>
    %80 = arith.mulf %76, %79 : vector<8x128xf32>
    %81 = arith.addf %78, %80 : vector<8x128xf32>
    %82 = math.tanh %81 : vector<8x128xf32>
    %cst_18 = arith.constant 1.000000e+00 : f32
    %83 = vector.broadcast %cst_18 : f32 to vector<8x128xf32>
    %84 = arith.subf %83, %77 : vector<8x128xf32>
    %85 = arith.mulf %84, %82 : vector<8x128xf32>
    %86 = arith.mulf %77, %61 : vector<8x128xf32>
    %87 = arith.addf %85, %86 : vector<8x128xf32>
    %88 = vector.extract_strided_slice %87 {offsets = [0, 0], sizes = [8, 32], strides = [1, 1]} : vector<8x128xf32> to vector<8x32xf32>
    %89 = arith.truncf %88 : vector<8x32xf32> to vector<8x32xbf16>
    %cst_19 = arith.constant dense<0.000000e+00> : vector<8x384xf32>
    %90 = tpu.matmul %89, %7, %cst_19 {dimension_numbers = #tpu.dot_dimension_numbers<[1], [0], [0], [1], [0, 0, 1, 1], [], []>} : vector<8x32xbf16>, vector<32x384xbf16>, vector<8x384xf32> -> vector<8x384xf32>
    %91 = vector.broadcast %8 : vector<1x384xf32> to vector<8x384xf32>
    %92 = arith.addf %90, %91 : vector<8x384xf32>
    %93 = vector.extract_strided_slice %6 {offsets = [24, 0], sizes = [8, 384], strides = [1, 1]} : vector<64x384xf32> to vector<8x384xf32>
    %94 = vector.extract_strided_slice %93 {offsets = [0, 0], sizes = [8, 256], strides = [1, 1]} : vector<8x384xf32> to vector<8x256xf32>
    %95 = vector.extract_strided_slice %92 {offsets = [0, 0], sizes = [8, 256], strides = [1, 1]} : vector<8x384xf32> to vector<8x256xf32>
    %96 = arith.addf %94, %95 : vector<8x256xf32>
    %97 = arith.negf %96 : vector<8x256xf32>
    %98 = math.exp %97 : vector<8x256xf32>
    %cst_20 = arith.constant 1.000000e+00 : f32
    %99 = vector.broadcast %cst_20 : f32 to vector<8x256xf32>
    %100 = arith.addf %99, %98 : vector<8x256xf32>
    %101 = arith.divf %99, %100 : vector<8x256xf32>
    %102 = vector.extract_strided_slice %101 {offsets = [0, 0], sizes = [8, 128], strides = [1, 1]} : vector<8x256xf32> to vector<8x128xf32>
    %103 = vector.extract_strided_slice %101 {offsets = [0, 128], sizes = [8, 128], strides = [1, 1]} : vector<8x256xf32> to vector<8x128xf32>
    %104 = vector.extract_strided_slice %93 {offsets = [0, 256], sizes = [8, 128], strides = [1, 1]} : vector<8x384xf32> to vector<8x128xf32>
    %105 = vector.extract_strided_slice %92 {offsets = [0, 256], sizes = [8, 128], strides = [1, 1]} : vector<8x384xf32> to vector<8x128xf32>
    %106 = arith.mulf %102, %105 : vector<8x128xf32>
    %107 = arith.addf %104, %106 : vector<8x128xf32>
    %108 = math.tanh %107 : vector<8x128xf32>
    %cst_21 = arith.constant 1.000000e+00 : f32
    %109 = vector.broadcast %cst_21 : f32 to vector<8x128xf32>
    %110 = arith.subf %109, %103 : vector<8x128xf32>
    %111 = arith.mulf %110, %108 : vector<8x128xf32>
    %112 = arith.mulf %103, %87 : vector<8x128xf32>
    %113 = arith.addf %111, %112 : vector<8x128xf32>
    %114 = vector.extract_strided_slice %113 {offsets = [0, 0], sizes = [8, 32], strides = [1, 1]} : vector<8x128xf32> to vector<8x32xf32>
    %115 = arith.truncf %114 : vector<8x32xf32> to vector<8x32xbf16>
    %cst_22 = arith.constant dense<0.000000e+00> : vector<8x384xf32>
    %116 = tpu.matmul %115, %7, %cst_22 {dimension_numbers = #tpu.dot_dimension_numbers<[1], [0], [0], [1], [0, 0, 1, 1], [], []>} : vector<8x32xbf16>, vector<32x384xbf16>, vector<8x384xf32> -> vector<8x384xf32>
    %117 = vector.broadcast %8 : vector<1x384xf32> to vector<8x384xf32>
    %118 = arith.addf %116, %117 : vector<8x384xf32>
    %119 = vector.extract_strided_slice %6 {offsets = [32, 0], sizes = [8, 384], strides = [1, 1]} : vector<64x384xf32> to vector<8x384xf32>
    %120 = vector.extract_strided_slice %119 {offsets = [0, 0], sizes = [8, 256], strides = [1, 1]} : vector<8x384xf32> to vector<8x256xf32>
    %121 = vector.extract_strided_slice %118 {offsets = [0, 0], sizes = [8, 256], strides = [1, 1]} : vector<8x384xf32> to vector<8x256xf32>
    %122 = arith.addf %120, %121 : vector<8x256xf32>
    %123 = arith.negf %122 : vector<8x256xf32>
    %124 = math.exp %123 : vector<8x256xf32>
    %cst_23 = arith.constant 1.000000e+00 : f32
    %125 = vector.broadcast %cst_23 : f32 to vector<8x256xf32>
    %126 = arith.addf %125, %124 : vector<8x256xf32>
    %127 = arith.divf %125, %126 : vector<8x256xf32>
    %128 = vector.extract_strided_slice %127 {offsets = [0, 0], sizes = [8, 128], strides = [1, 1]} : vector<8x256xf32> to vector<8x128xf32>
    %129 = vector.extract_strided_slice %127 {offsets = [0, 128], sizes = [8, 128], strides = [1, 1]} : vector<8x256xf32> to vector<8x128xf32>
    %130 = vector.extract_strided_slice %119 {offsets = [0, 256], sizes = [8, 128], strides = [1, 1]} : vector<8x384xf32> to vector<8x128xf32>
    %131 = vector.extract_strided_slice %118 {offsets = [0, 256], sizes = [8, 128], strides = [1, 1]} : vector<8x384xf32> to vector<8x128xf32>
    %132 = arith.mulf %128, %131 : vector<8x128xf32>
    %133 = arith.addf %130, %132 : vector<8x128xf32>
    %134 = math.tanh %133 : vector<8x128xf32>
    %cst_24 = arith.constant 1.000000e+00 : f32
    %135 = vector.broadcast %cst_24 : f32 to vector<8x128xf32>
    %136 = arith.subf %135, %129 : vector<8x128xf32>
    %137 = arith.mulf %136, %134 : vector<8x128xf32>
    %138 = arith.mulf %129, %113 : vector<8x128xf32>
    %139 = arith.addf %137, %138 : vector<8x128xf32>
    %140 = vector.extract_strided_slice %139 {offsets = [0, 0], sizes = [8, 32], strides = [1, 1]} : vector<8x128xf32> to vector<8x32xf32>
    %141 = arith.truncf %140 : vector<8x32xf32> to vector<8x32xbf16>
    %cst_25 = arith.constant dense<0.000000e+00> : vector<8x384xf32>
    %142 = tpu.matmul %141, %7, %cst_25 {dimension_numbers = #tpu.dot_dimension_numbers<[1], [0], [0], [1], [0, 0, 1, 1], [], []>} : vector<8x32xbf16>, vector<32x384xbf16>, vector<8x384xf32> -> vector<8x384xf32>
    %143 = vector.broadcast %8 : vector<1x384xf32> to vector<8x384xf32>
    %144 = arith.addf %142, %143 : vector<8x384xf32>
    %145 = vector.extract_strided_slice %6 {offsets = [40, 0], sizes = [8, 384], strides = [1, 1]} : vector<64x384xf32> to vector<8x384xf32>
    %146 = vector.extract_strided_slice %145 {offsets = [0, 0], sizes = [8, 256], strides = [1, 1]} : vector<8x384xf32> to vector<8x256xf32>
    %147 = vector.extract_strided_slice %144 {offsets = [0, 0], sizes = [8, 256], strides = [1, 1]} : vector<8x384xf32> to vector<8x256xf32>
    %148 = arith.addf %146, %147 : vector<8x256xf32>
    %149 = arith.negf %148 : vector<8x256xf32>
    %150 = math.exp %149 : vector<8x256xf32>
    %cst_26 = arith.constant 1.000000e+00 : f32
    %151 = vector.broadcast %cst_26 : f32 to vector<8x256xf32>
    %152 = arith.addf %151, %150 : vector<8x256xf32>
    %153 = arith.divf %151, %152 : vector<8x256xf32>
    %154 = vector.extract_strided_slice %153 {offsets = [0, 0], sizes = [8, 128], strides = [1, 1]} : vector<8x256xf32> to vector<8x128xf32>
    %155 = vector.extract_strided_slice %153 {offsets = [0, 128], sizes = [8, 128], strides = [1, 1]} : vector<8x256xf32> to vector<8x128xf32>
    %156 = vector.extract_strided_slice %145 {offsets = [0, 256], sizes = [8, 128], strides = [1, 1]} : vector<8x384xf32> to vector<8x128xf32>
    %157 = vector.extract_strided_slice %144 {offsets = [0, 256], sizes = [8, 128], strides = [1, 1]} : vector<8x384xf32> to vector<8x128xf32>
    %158 = arith.mulf %154, %157 : vector<8x128xf32>
    %159 = arith.addf %156, %158 : vector<8x128xf32>
    %160 = math.tanh %159 : vector<8x128xf32>
    %cst_27 = arith.constant 1.000000e+00 : f32
    %161 = vector.broadcast %cst_27 : f32 to vector<8x128xf32>
    %162 = arith.subf %161, %155 : vector<8x128xf32>
    %163 = arith.mulf %162, %160 : vector<8x128xf32>
    %164 = arith.mulf %155, %139 : vector<8x128xf32>
    %165 = arith.addf %163, %164 : vector<8x128xf32>
    %166 = vector.extract_strided_slice %165 {offsets = [0, 0], sizes = [8, 32], strides = [1, 1]} : vector<8x128xf32> to vector<8x32xf32>
    %167 = arith.truncf %166 : vector<8x32xf32> to vector<8x32xbf16>
    %cst_28 = arith.constant dense<0.000000e+00> : vector<8x384xf32>
    %168 = tpu.matmul %167, %7, %cst_28 {dimension_numbers = #tpu.dot_dimension_numbers<[1], [0], [0], [1], [0, 0, 1, 1], [], []>} : vector<8x32xbf16>, vector<32x384xbf16>, vector<8x384xf32> -> vector<8x384xf32>
    %169 = vector.broadcast %8 : vector<1x384xf32> to vector<8x384xf32>
    %170 = arith.addf %168, %169 : vector<8x384xf32>
    %171 = vector.extract_strided_slice %6 {offsets = [48, 0], sizes = [8, 384], strides = [1, 1]} : vector<64x384xf32> to vector<8x384xf32>
    %172 = vector.extract_strided_slice %171 {offsets = [0, 0], sizes = [8, 256], strides = [1, 1]} : vector<8x384xf32> to vector<8x256xf32>
    %173 = vector.extract_strided_slice %170 {offsets = [0, 0], sizes = [8, 256], strides = [1, 1]} : vector<8x384xf32> to vector<8x256xf32>
    %174 = arith.addf %172, %173 : vector<8x256xf32>
    %175 = arith.negf %174 : vector<8x256xf32>
    %176 = math.exp %175 : vector<8x256xf32>
    %cst_29 = arith.constant 1.000000e+00 : f32
    %177 = vector.broadcast %cst_29 : f32 to vector<8x256xf32>
    %178 = arith.addf %177, %176 : vector<8x256xf32>
    %179 = arith.divf %177, %178 : vector<8x256xf32>
    %180 = vector.extract_strided_slice %179 {offsets = [0, 0], sizes = [8, 128], strides = [1, 1]} : vector<8x256xf32> to vector<8x128xf32>
    %181 = vector.extract_strided_slice %179 {offsets = [0, 128], sizes = [8, 128], strides = [1, 1]} : vector<8x256xf32> to vector<8x128xf32>
    %182 = vector.extract_strided_slice %171 {offsets = [0, 256], sizes = [8, 128], strides = [1, 1]} : vector<8x384xf32> to vector<8x128xf32>
    %183 = vector.extract_strided_slice %170 {offsets = [0, 256], sizes = [8, 128], strides = [1, 1]} : vector<8x384xf32> to vector<8x128xf32>
    %184 = arith.mulf %180, %183 : vector<8x128xf32>
    %185 = arith.addf %182, %184 : vector<8x128xf32>
    %186 = math.tanh %185 : vector<8x128xf32>
    %cst_30 = arith.constant 1.000000e+00 : f32
    %187 = vector.broadcast %cst_30 : f32 to vector<8x128xf32>
    %188 = arith.subf %187, %181 : vector<8x128xf32>
    %189 = arith.mulf %188, %186 : vector<8x128xf32>
    %190 = arith.mulf %181, %165 : vector<8x128xf32>
    %191 = arith.addf %189, %190 : vector<8x128xf32>
    %192 = vector.extract_strided_slice %191 {offsets = [0, 0], sizes = [8, 32], strides = [1, 1]} : vector<8x128xf32> to vector<8x32xf32>
    %193 = arith.truncf %192 : vector<8x32xf32> to vector<8x32xbf16>
    %cst_31 = arith.constant dense<0.000000e+00> : vector<8x384xf32>
    %194 = tpu.matmul %193, %7, %cst_31 {dimension_numbers = #tpu.dot_dimension_numbers<[1], [0], [0], [1], [0, 0, 1, 1], [], []>} : vector<8x32xbf16>, vector<32x384xbf16>, vector<8x384xf32> -> vector<8x384xf32>
    %195 = vector.broadcast %8 : vector<1x384xf32> to vector<8x384xf32>
    %196 = arith.addf %194, %195 : vector<8x384xf32>
    %197 = vector.extract_strided_slice %6 {offsets = [56, 0], sizes = [8, 384], strides = [1, 1]} : vector<64x384xf32> to vector<8x384xf32>
    %198 = vector.extract_strided_slice %197 {offsets = [0, 0], sizes = [8, 256], strides = [1, 1]} : vector<8x384xf32> to vector<8x256xf32>
    %199 = vector.extract_strided_slice %196 {offsets = [0, 0], sizes = [8, 256], strides = [1, 1]} : vector<8x384xf32> to vector<8x256xf32>
    %200 = arith.addf %198, %199 : vector<8x256xf32>
    %201 = arith.negf %200 : vector<8x256xf32>
    %202 = math.exp %201 : vector<8x256xf32>
    %cst_32 = arith.constant 1.000000e+00 : f32
    %203 = vector.broadcast %cst_32 : f32 to vector<8x256xf32>
    %204 = arith.addf %203, %202 : vector<8x256xf32>
    %205 = arith.divf %203, %204 : vector<8x256xf32>
    %206 = vector.extract_strided_slice %205 {offsets = [0, 0], sizes = [8, 128], strides = [1, 1]} : vector<8x256xf32> to vector<8x128xf32>
    %207 = vector.extract_strided_slice %205 {offsets = [0, 128], sizes = [8, 128], strides = [1, 1]} : vector<8x256xf32> to vector<8x128xf32>
    %208 = vector.extract_strided_slice %197 {offsets = [0, 256], sizes = [8, 128], strides = [1, 1]} : vector<8x384xf32> to vector<8x128xf32>
    %209 = vector.extract_strided_slice %196 {offsets = [0, 256], sizes = [8, 128], strides = [1, 1]} : vector<8x384xf32> to vector<8x128xf32>
    %210 = arith.mulf %206, %209 : vector<8x128xf32>
    %211 = arith.addf %208, %210 : vector<8x128xf32>
    %212 = math.tanh %211 : vector<8x128xf32>
    %cst_33 = arith.constant 1.000000e+00 : f32
    %213 = vector.broadcast %cst_33 : f32 to vector<8x128xf32>
    %214 = arith.subf %213, %207 : vector<8x128xf32>
    %215 = arith.mulf %214, %212 : vector<8x128xf32>
    %216 = arith.mulf %207, %191 : vector<8x128xf32>
    %217 = arith.addf %215, %216 : vector<8x128xf32>
    %218 = vector.extract_strided_slice %217 {offsets = [0, 0], sizes = [8, 32], strides = [1, 1]} : vector<8x128xf32> to vector<8x32xf32>
    %c0_34 = arith.constant 0 : index
    %c0_35 = arith.constant 0 : index
    %219 = vector.load %arg6[%c0_34, %c0_35] : memref<32x128xf32, #tpu.memory_space<vmem>>, vector<32x128xf32>
    %cst_36 = arith.constant dense<0.000000e+00> : vector<8x128xf32>
    %220 = tpu.matmul %218, %219, %cst_36 {dimension_numbers = #tpu.dot_dimension_numbers<[1], [0], [0], [1], [0, 0, 1, 1], [], []>} : vector<8x32xf32>, vector<32x128xf32>, vector<8x128xf32> -> vector<8x128xf32>
    %c0_37 = arith.constant 0 : index
    %c0_38 = arith.constant 0 : index
    %221 = vector.load %arg7[%c0_37, %c0_38] : memref<1x128xf32, #tpu.memory_space<vmem>>, vector<1x128xf32>
    %222 = vector.broadcast %221 : vector<1x128xf32> to vector<8x128xf32>
    %223 = arith.addf %220, %222 : vector<8x128xf32>
    %c0_39 = arith.constant 0 : index
    %c0_40 = arith.constant 0 : index
    %224 = vector.load %arg8[%c0_39, %c0_40] : memref<8x128xf32, #tpu.memory_space<vmem>>, vector<8x128xf32>
    tpu.vector_store %arg8[%c0_39, %c0_40], %223 {strides = array<i32>} : memref<8x128xf32, #tpu.memory_space<vmem>>, vector<8x128xf32>,
    return
  }
  func.func @transform_0(%arg0: i32) -> (i32, i32) {
    %c0_i32 = arith.constant 0 : i32
    %c0_i32_0 = arith.constant 0 : i32
    return %arg0, %c0_i32 : i32, i32
  }
  func.func @transform_1(%arg0: i32) -> (i32, i32) {
    %c0_i32 = arith.constant 0 : i32
    %c0_i32_0 = arith.constant 0 : i32
    %c0_i32_1 = arith.constant 0 : i32
    return %c0_i32, %c0_i32_0 : i32, i32
  }
  func.func @transform_2(%arg0: i32) -> (i32, i32) {
    %c0_i32 = arith.constant 0 : i32
    %c0_i32_0 = arith.constant 0 : i32
    %c0_i32_1 = arith.constant 0 : i32
    return %c0_i32, %c0_i32_0 : i32, i32
  }
  func.func @transform_3(%arg0: i32) -> (i32, i32) {
    %c0_i32 = arith.constant 0 : i32
    %c0_i32_0 = arith.constant 0 : i32
    %c0_i32_1 = arith.constant 0 : i32
    return %c0_i32, %c0_i32_0 : i32, i32
  }
  func.func @transform_4(%arg0: i32) -> (i32, i32) {
    %c0_i32 = arith.constant 0 : i32
    %c0_i32_0 = arith.constant 0 : i32
    %c0_i32_1 = arith.constant 0 : i32
    return %c0_i32, %c0_i32_0 : i32, i32
  }
  func.func @transform_5(%arg0: i32) -> (i32, i32) {
    %c0_i32 = arith.constant 0 : i32
    %c0_i32_0 = arith.constant 0 : i32
    %c0_i32_1 = arith.constant 0 : i32
    return %c0_i32, %c0_i32_0 : i32, i32
  }
  func.func @transform_6(%arg0: i32) -> (i32, i32) {
    %c0_i32 = arith.constant 0 : i32
    %c0_i32_0 = arith.constant 0 : i32
    %c0_i32_1 = arith.constant 0 : i32
    return %c0_i32, %c0_i32_0 : i32, i32
  }
  func.func @transform_7(%arg0: i32) -> (i32, i32) {
    %c0_i32 = arith.constant 0 : i32
    %c0_i32_0 = arith.constant 0 : i32
    return %arg0, %c0_i32 : i32, i32
  }
}

</mosaic_0001>

<llo_original>
// kernel: tpu_custom_call.1
$region0: #{tpu_custom_call.1}
  #allocation0 [shape = 'u32[]', space=smem, size = 0x4, offset = 0x4, fixed_abs, tag = 'smem constant byte address 0x4 - core index']
  #allocation1 [shape = 'u32[144,128]{1,0:T(1,128)}', space=vmem, size = 0x12000, scoped, tag = 'internal scratch']
  %s0 = inlined_call_operand.vmem [shape: f32[128,16], index: 0, kind: input, shape index: {}]
  %s1 = inlined_call_operand.vmem [shape: bf16[16,384], index: 1, kind: input, shape index: {}]
  %s2 = inlined_call_operand.vmem [shape: bf16[32,384], index: 2, kind: input, shape index: {}]
  %s3 = inlined_call_operand.vmem [shape: f32[1,384], index: 3, kind: input, shape index: {}]
  %s4 = inlined_call_operand.vmem [shape: f32[1,384], index: 4, kind: input, shape index: {}]
  %s5 = inlined_call_operand.vmem [shape: f32[32,128], index: 5, kind: input, shape index: {}]
  %s6 = inlined_call_operand.vmem [shape: f32[1,128], index: 6, kind: input, shape index: {}]
  %s7 = inlined_call_operand.hbm [shape: f32[16,128], index: 7, kind: output, shape index: {}]
  %s8 = sld [smem:[#allocation0]]
  $region61: #{tpu_custom_call.1} parent=0
    _
  %s10 = ssub.s32 1, %s8
  %s11 = scalar_select 0, %s10, %s8
  $region1: #{tpu_custom_call.1} parent=0
    #allocation2 [shape = 'u8[8192]{0}', space=vmem, size = 0x2000, scoped, tag = 'output window, operand 0']
    #allocation3 [shape = 's32[2]{0}', space=sflag, size = 0x8, scoped, tag = 'scoped memory for tpu_custom_call.1']
    %12 = vsyncpa [#allocation3], 0
    %s13 = scalar_lea.sflag [#allocation3], 1
    %14 = vsyncpa %s13, 0
    loop: start=0, step=1, limit=4
    $region2: #{tpu_custom_call.1} parent=1 // loop_pre_header
      _
    $region3: #{tpu_custom_call.1} parent=1 // loop_header
      %s16 = sphi 0, %s20
      %p17 = scmp.ge.s32.totalorder %s16, 4
      %s26 = sphi 0, %s28
      %s29 = sphi 0, %s26
      %s30 = sphi 0, %s29
      %s46 = sphi 0, %s30
      %s50 = sphi 0, %s50
      %s52 = sphi 0, %s50
      %s53 = sphi 0, %s52
      %s67 = sphi 0, %s53
      %s71 = sphi 0, %s71
      %s73 = sphi 0, %s71
      %s74 = sphi 0, %s73
      %s88 = sphi 0, %s74
      %s92 = sphi 0, %s92
      %s94 = sphi 0, %s92
      %s95 = sphi 0, %s94
      %s109 = sphi 0, %s95
      %s113 = sphi 0, %s113
      %s115 = sphi 0, %s113
      %s116 = sphi 0, %s115
      %s130 = sphi 0, %s116
      %s134 = sphi 0, %s134
      %s136 = sphi 0, %s134
      %s137 = sphi 0, %s136
      %s151 = sphi 0, %s137
      %s155 = sphi 0, %s155
      %s157 = sphi 0, %s155
      %s158 = sphi 0, %s157
      %s172 = sphi 0, %s158
      %s178 = sphi 0, %s180
      %s181 = sphi 0, %s178
      %s182 = sphi 0, %s181
      %s198 = sphi 0, %s182
    $region4: #{tpu_custom_call.1} parent=1 // loop_header_branch
      %19 = sbr.rel (%p17) target = $region8
    $region5: #{tpu_custom_call.1} parent=1 // loop_body
      %s21 = ssub.s32 %s16, 1
      %s22 = ssub.s32 %s16, 2
      %s23 = sadd.s32 %s16, 1
      %s24 = ssub.s32 %s16, %s23
      %p25 = scmp.eq.s32.totalorder %s24, 0
      %s27 = sadd.s32 %s26, 1
      %s28 = scalar_select %p25, %s26, %s27
      %p31 = pneg %p25
      %p32 = scmp.eq.s32.totalorder %s16, 1
      %p33 = por %p31, %p32
      %p34 = scmp.ne.s32.totalorder %s26, %s29
      %p35 = scmp.eq.s32.totalorder %s16, 0
      %p36 = por %p34, %p35
      %p37 = scmp.ne.s32.totalorder %s26, %s29
      %p38 = scmp.eq.s32.totalorder %s21, 1
      %p39 = por %p37, %p38
      %p40 = scmp.ne.s32.totalorder %s29, %s30
      %p41 = scmp.eq.s32.totalorder %s21, 0
      %p42 = por %p40, %p41
      %p43 = scmp.ne.s32.totalorder %s29, %s30
      %p44 = scmp.eq.s32.totalorder %s22, 1
      %p45 = por %p43, %p44
      %p47 = scmp.ne.s32.totalorder %s30, %s46
      %p48 = scmp.eq.s32.totalorder %s22, 0
      %p49 = por %p47, %p48
      %s51 = sadd.s32 %s50, 1
      %p54 = scmp.eq.s32.totalorder %s16, 1
      %p55 = scmp.ne.s32.totalorder %s50, %s52
      %p56 = scmp.eq.s32.totalorder %s16, 0
      %p57 = por %p55, %p56
      %p58 = scmp.ne.s32.totalorder %s50, %s52
      %p59 = scmp.eq.s32.totalorder %s21, 1
      %p60 = por %p58, %p59
      %p61 = scmp.ne.s32.totalorder %s52, %s53
      %p62 = scmp.eq.s32.totalorder %s21, 0
      %p63 = por %p61, %p62
      %p64 = scmp.ne.s32.totalorder %s52, %s53
      %p65 = scmp.eq.s32.totalorder %s22, 1
      %p66 = por %p64, %p65
      %p68 = scmp.ne.s32.totalorder %s53, %s67
      %p69 = scmp.eq.s32.totalorder %s22, 0
      %p70 = por %p68, %p69
      %s72 = sadd.s32 %s71, 1
      %p75 = scmp.eq.s32.totalorder %s16, 1
      %p76 = scmp.ne.s32.totalorder %s71, %s73
      %p77 = scmp.eq.s32.totalorder %s16, 0
      %p78 = por %p76, %p77
      %p79 = scmp.ne.s32.totalorder %s71, %s73
      %p80 = scmp.eq.s32.totalorder %s21, 1
      %p81 = por %p79, %p80
      %p82 = scmp.ne.s32.totalorder %s73, %s74
      %p83 = scmp.eq.s32.totalorder %s21, 0
      %p84 = por %p82, %p83
      %p85 = scmp.ne.s32.totalorder %s73, %s74
      %p86 = scmp.eq.s32.totalorder %s22, 1
      %p87 = por %p85, %p86
      %p89 = scmp.ne.s32.totalorder %s74, %s88
      %p90 = scmp.eq.s32.totalorder %s22, 0
      %p91 = por %p89, %p90
      %s93 = sadd.s32 %s92, 1
      %p96 = scmp.eq.s32.totalorder %s16, 1
      %p97 = scmp.ne.s32.totalorder %s92, %s94
      %p98 = scmp.eq.s32.totalorder %s16, 0
      %p99 = por %p97, %p98
      %p100 = scmp.ne.s32.totalorder %s92, %s94
      %p101 = scmp.eq.s32.totalorder %s21, 1
      %p102 = por %p100, %p101
      %p103 = scmp.ne.s32.totalorder %s94, %s95
      %p104 = scmp.eq.s32.totalorder %s21, 0
      %p105 = por %p103, %p104
      %p106 = scmp.ne.s32.totalorder %s94, %s95
      %p107 = scmp.eq.s32.totalorder %s22, 1
      %p108 = por %p106, %p107
      %p110 = scmp.ne.s32.totalorder %s95, %s109
      %p111 = scmp.eq.s32.totalorder %s22, 0
      %p112 = por %p110, %p111
      %s114 = sadd.s32 %s113, 1
      %p117 = scmp.eq.s32.totalorder %s16, 1
      %p118 = scmp.ne.s32.totalorder %s113, %s115
      %p119 = scmp.eq.s32.totalorder %s16, 0
      %p120 = por %p118, %p119
      %p121 = scmp.ne.s32.totalorder %s113, %s115
      %p122 = scmp.eq.s32.totalorder %s21, 1
      %p123 = por %p121, %p122
      %p124 = scmp.ne.s32.totalorder %s115, %s116
      %p125 = scmp.eq.s32.totalorder %s21, 0
      %p126 = por %p124, %p125
      %p127 = scmp.ne.s32.totalorder %s115, %s116
      %p128 = scmp.eq.s32.totalorder %s22, 1
      %p129 = por %p127, %p128
      %p131 = scmp.ne.s32.totalorder %s116, %s130
      %p132 = scmp.eq.s32.totalorder %s22, 0
      %p133 = por %p131, %p132
      %s135 = sadd.s32 %s134, 1
      %p138 = scmp.eq.s32.totalorder %s16, 1
      %p139 = scmp.ne.s32.totalorder %s134, %s136
      %p140 = scmp.eq.s32.totalorder %s16, 0
      %p141 = por %p139, %p140
      %p142 = scmp.ne.s32.totalorder %s134, %s136
      %p143 = scmp.eq.s32.totalorder %s21, 1
      %p144 = por %p142, %p143
      %p145 = scmp.ne.s32.totalorder %s136, %s137
      %p146 = scmp.eq.s32.totalorder %s21, 0
      %p147 = por %p145, %p146
      %p148 = scmp.ne.s32.totalorder %s136, %s137
      %p149 = scmp.eq.s32.totalorder %s22, 1
      %p150 = por %p148, %p149
      %p152 = scmp.ne.s32.totalorder %s137, %s151
      %p153 = scmp.eq.s32.totalorder %s22, 0
      %p154 = por %p152, %p153
      %s156 = sadd.s32 %s155, 1
      %p159 = scmp.eq.s32.totalorder %s16, 1
      %p160 = scmp.ne.s32.totalorder %s155, %s157
      %p161 = scmp.eq.s32.totalorder %s16, 0
      %p162 = por %p160, %p161
      %p163 = scmp.ne.s32.totalorder %s155, %s157
      %p164 = scmp.eq.s32.totalorder %s21, 1
      %p165 = por %p163, %p164
      %p166 = scmp.ne.s32.totalorder %s157, %s158
      %p167 = scmp.eq.s32.totalorder %s21, 0
      %p168 = por %p166, %p167
      %p169 = scmp.ne.s32.totalorder %s157, %s158
      %p170 = scmp.eq.s32.totalorder %s22, 1
      %p171 = por %p169, %p170
      %p173 = scmp.ne.s32.totalorder %s158, %s172
      %p174 = scmp.eq.s32.totalorder %s22, 0
      %p175 = por %p173, %p174
      %s176 = ssub.s32 %s16, %s23
      %p177 = scmp.eq.s32.totalorder %s176, 0
      %s179 = sadd.s32 %s178, 1
      %s180 = scalar_select %p177, %s178, %s179
      %p183 = pneg %p177
      %p184 = scmp.eq.s32.totalorder %s16, 1
      %p185 = por %p183, %p184
      %p186 = scmp.ne.s32.totalorder %s178, %s181
      %p187 = scmp.eq.s32.totalorder %s16, 0
      %p188 = por %p186, %p187
      %p189 = scmp.ne.s32.totalorder %s178, %s181
      %p190 = scmp.eq.s32.totalorder %s21, 1
      %p191 = por %p189, %p190
      %p192 = scmp.ne.s32.totalorder %s181, %s182
      %p193 = scmp.eq.s32.totalorder %s21, 0
      %p194 = por %p192, %p193
      %p195 = scmp.ne.s32.totalorder %s181, %s182
      %p196 = scmp.eq.s32.totalorder %s22, 1
      %p197 = por %p195, %p196
      %p199 = scmp.ne.s32.totalorder %s182, %s198
      %p200 = scmp.eq.s32.totalorder %s22, 0
      %p201 = por %p199, %p200
      %p202 = scmp.le.s32.totalorder 1, %s16
      %p203 = scmp.lt.s32.totalorder %s16, 3
      %p204 = pnand %p202, %p203
      %p205 = pneg %p204
      // Predicated region
      $region9: #{tpu_custom_call.1} parent=5 // pred_check
        _
      $region10: #{tpu_custom_call.1} parent=5 // pred_check_branch
        %207 = sbr.rel (%p204) target = $region12
      $region11: #{tpu_custom_call.1} parent=5 // pred_region
        %s208 = ssub.s32 %s16, 1
        // Predicated region
        $region13: #{tpu_custom_call.1} parent=11 // pred_check
          %p209 = pneg %p63
        $region14: #{tpu_custom_call.1} parent=11 // pred_check_branch
          %211 = sbr.rel (%p209) target = $region16
        $region15: #{tpu_custom_call.1} parent=11 // pred_region
          _
        $region16: #{tpu_custom_call.1} parent=11 // pred_fallthru
          _
        // Predicated region
        $region17: #{tpu_custom_call.1} parent=11 // pred_check
          %p212 = pneg %p84
        $region18: #{tpu_custom_call.1} parent=11 // pred_check_branch
          %214 = sbr.rel (%p212) target = $region20
        $region19: #{tpu_custom_call.1} parent=11 // pred_region
          _
        $region20: #{tpu_custom_call.1} parent=11 // pred_fallthru
          _
        // Predicated region
        $region21: #{tpu_custom_call.1} parent=11 // pred_check
          %p215 = pneg %p105
        $region22: #{tpu_custom_call.1} parent=11 // pred_check_branch
          %217 = sbr.rel (%p215) target = $region24
        $region23: #{tpu_custom_call.1} parent=11 // pred_region
          _
        $region24: #{tpu_custom_call.1} parent=11 // pred_fallthru
          _
        // Predicated region
        $region25: #{tpu_custom_call.1} parent=11 // pred_check
          %p218 = pneg %p126
        $region26: #{tpu_custom_call.1} parent=11 // pred_check_branch
          %220 = sbr.rel (%p218) target = $region28
        $region27: #{tpu_custom_call.1} parent=11 // pred_region
          _
        $region28: #{tpu_custom_call.1} parent=11 // pred_fallthru
          _
        // Predicated region
        $region29: #{tpu_custom_call.1} parent=11 // pred_check
          %p221 = pneg %p147
        $region30: #{tpu_custom_call.1} parent=11 // pred_check_branch
          %223 = sbr.rel (%p221) target = $region32
        $region31: #{tpu_custom_call.1} parent=11 // pred_region
          _
        $region32: #{tpu_custom_call.1} parent=11 // pred_fallthru
          _
        // Predicated region
        $region33: #{tpu_custom_call.1} parent=11 // pred_check
          %p224 = pneg %p168
        $region34: #{tpu_custom_call.1} parent=11 // pred_check_branch
          %226 = sbr.rel (%p224) target = $region36
        $region35: #{tpu_custom_call.1} parent=11 // pred_region
          _
        $region36: #{tpu_custom_call.1} parent=11 // pred_fallthru
          _
      $region12: #{tpu_custom_call.1} parent=5 // pred_fallthru
        _
      %p227 = scmp.lt.s32.totalorder %s16, 2
      // Predicated region
      $region37: #{tpu_custom_call.1} parent=5 // pred_check
        %p228 = pneg %p227
      $region38: #{tpu_custom_call.1} parent=5 // pred_check_branch
        %230 = sbr.rel (%p228) target = $region40
      $region39: #{tpu_custom_call.1} parent=5 // pred_region
        // Predicated region
        $region41: #{tpu_custom_call.1} parent=39 // pred_check
          %p231 = pneg %p36
        $region42: #{tpu_custom_call.1} parent=39 // pred_check_branch
          %233 = sbr.rel (%p231) target = $region44
        $region43: #{tpu_custom_call.1} parent=39 // pred_region
          %s234 = smul.u32 8, %s16
          %p235 = scmp.lt.s32.totalorder %s234, 15
          %s236 = scalar_select %p235, %s234, 15
          %s237 = smul.addr %s236, 8
          %s238 = scalar_lea.vmem %s0, %s237
          %s239 = smul.u32 8, %s16
        $region44: #{tpu_custom_call.1} parent=39 // pred_fallthru
          _
      $region40: #{tpu_custom_call.1} parent=5 // pred_fallthru
        _
      %p240 = scmp.le.s32.totalorder 1, %s16
      %p241 = scmp.lt.s32.totalorder %s16, 3
      %p242 = pnand %p240, %p241
      %p243 = pneg %p242
      // Predicated region
      $region45: #{tpu_custom_call.1} parent=5 // pred_check
        _
      $region46: #{tpu_custom_call.1} parent=5 // pred_check_branch
        %245 = sbr.rel (%p242) target = $region48
      $region47: #{tpu_custom_call.1} parent=5 // pred_region
        %s246 = ssub.s32 %s16, 1
        %s247 = smul.u32 8, %s21
        %p248 = scmp.lt.s32.totalorder %s247, 15
        %s249 = scalar_select %p248, %s247, 15
        %s250 = smul.addr %s249, 8
        %s251 = scalar_lea.vmem %s0, %s250
        %p252 = pneg %p42
        %p253 = pneg %p39
        %p254 = pneg %p63
        %p255 = pneg %p60
        %p256 = pneg %p84
        %p257 = pneg %p81
        %p258 = pneg %p105
        %p259 = pneg %p102
        %p260 = pneg %p126
        %p261 = pneg %p123
        %p262 = pneg %p147
        %p263 = pneg %p144
        %p264 = pneg %p168
        %p265 = pneg %p165
        %p266 = pneg %p194
        %p267 = pneg %p191
        %s268 = sand.u32 %s181, 1
        %s269 = scalar_lea.sflag [#allocation3], %s268
        %s270 = sand.u32 %s181, 1
        %s271 = smul.addr %s270, 8
        %s272 = scalar_lea.vmem [#allocation2], %s271
        %s273 = smul.u32 8, %s21
        %p274 = scmp.lt.s32.totalorder %s273, 15
        %s275 = scalar_select %p274, %s273, 15
        %s276 = smul.addr %s275, 8
        %s277 = scalar_lea.vmem %s0, %s276
        %s278 = smul.u32 8, %s21
        %v280 = vld [vmem:[%s277] sm:$0xff]
        %v281 = vld [vmem:[%s277 + $0x8] sm:$0xff]
        %v282 = vld [vmem:[%s277 + $0x10] sm:$0xff]
        %v283 = vld [vmem:[%s277 + $0x18] sm:$0xff]
        %v284 = vld [vmem:[%s277 + $0x20] sm:$0xff]
        %v285 = vld [vmem:[%s277 + $0x28] sm:$0xff]
        %v286 = vld [vmem:[%s277 + $0x30] sm:$0xff]
        %v287 = vld [vmem:[%s277 + $0x38] sm:$0xff]
        %v288 = vpack.c.bf16 %v281, %v280
        %v289 = vpack.c.bf16 %v283, %v282
        %v290 = vpack.c.bf16 %v285, %v284
        %v291 = vpack.c.bf16 %v287, %v286
        %v292 = vld [vmem:[%s1] sm:$0xff]
        %v293 = vld [vmem:[%s1 + $0x8] sm:$0xf]
        %v294 = vld [vmem:[%s1 + $0xc] sm:$0xff]
        %v295 = vld [vmem:[%s1 + $0x14] sm:$0xf]
        %v296 = vld [vmem:[%s3] sm:$0x7]
        %v298 = vlaneseq
        %v299 = vshrl.u32 %v298, 7
        %v300 = vsub.s32 0, %v299
        %v301 = vrot.slane %v296, %v300
        %v302 = vlaneseq
        %v303 = vshrl.u32 %v302, 7
        %v304 = vsub.s32 1, %v303
        %v305 = vrot.slane %v296, %v304
        %v306 = vlaneseq
        %v307 = vshrl.u32 %v306, 7
        %v308 = vsub.s32 2, %v307
        %v309 = vrot.slane %v296, %v308
        %v317 = vunpack.c.l.b16 %v292
        %v318 = vunpack.c.h.b16 %v292
        %v319 = vunpack.c.l.b16 %v293
        %v320 = vunpack.c.l.b16 %v294
        %v321 = vunpack.c.h.b16 %v294
        %v322 = vunpack.c.l.b16 %v295
        %v323 = vpack.c.b16 %v320, %v317
        %v324 = vpack.c.b16 %v321, %v318
        %v325 = vpack.c.b16 %v322, %v319
        %vm329 = vcmask 130048
        %v331 = vsel %vm329, %v288, 0
        %v334 = vsel %vm329, %v289, 0
        %v337 = vsel %vm329, %v290, 0
        %v340 = vsel %vm329, %v291, 0
        %342 = vmatprep.subr.bf16.mxu0 %v324
        %343 = vmatpush1.bf16.msra.mxu0 %v323
        %344 = vmatprep.subr.bf16.mxu0 0
        %345 = vmatpush1.bf16.msra.mxu0 0
        %346 = vmatprep.subr.bf16.mxu0 0
        %347 = vmatpush1.bf16.msra.mxu0 0
        %348 = vmatprep.subr.bf16.mxu0 0
        %349 = vmatpush1.bf16.msra.mxu0 0
        %350 = vmatprep.subr.bf16.mxu0 0
        %351 = vmatpush1.bf16.msra.mxu0 0
        %352 = vmatprep.subr.bf16.mxu0 0
        %353 = vmatpush1.bf16.msra.mxu0 0
        %354 = vmatprep.subr.bf16.mxu0 0
        %355 = vmatpush1.bf16.msra.mxu0 0
        %356 = vmatprep.subr.bf16.mxu0 0
        %357 = vmatpush1.bf16.msra.mxu0 0
        %358 = vmatprep.subr.bf16.mxu0 0
        %359 = vmatpush1.bf16.msra.mxu0 0
        %360 = vmatprep.subr.bf16.mxu0 0
        %361 = vmatpush1.bf16.msra.mxu0 0
        %362 = vmatprep.subr.bf16.mxu0 0
        %363 = vmatpush1.bf16.msra.mxu0 0
        %364 = vmatprep.subr.bf16.mxu0 0
        %365 = vmatpush1.bf16.msra.mxu0 0
        %366 = vmatprep.subr.bf16.mxu0 0
        %367 = vmatpush1.bf16.msra.mxu0 0
        %368 = vmatprep.subr.bf16.mxu0 0
        %369 = vmatpush1.bf16.msra.mxu0 0
        %370 = vmatprep.subr.bf16.mxu0 0
        %371 = vmatpush1.bf16.msra.mxu0 0
        %372 = vmatprep.subr.bf16.mxu0 0
        %373 = vmatpush1.bf16.msra.mxu0 0
        %374 = vmatprep.mubr.bf16.mxu0 0
        %375 = vmatmul.mubr.bf16.gmra.mrb[0].mxu0 %v331
        %v376 = vpop.f32.mrb[0].mxu0
        %v377 = vadd.f32 %v301, %v376
        %v378 = vpop.f32.mrb[0].mxu0
        %v379 = vadd.f32 %v305, %v378
        %v380 = vpop.f32.mrb[0].mxu0
        %v381 = vadd.f32 %v301, %v380
        %v382 = vpop.f32.mrb[0].mxu0
        %v383 = vadd.f32 %v305, %v382
        %384 = vmatprep.mubr.bf16.mxu0 0
        %385 = vmatmul.mubr.bf16.gmra.mrb[0].mxu0 %v334
        %v386 = vpop.f32.mrb[0].mxu0
        %v387 = vadd.f32 %v301, %v386
        %v388 = vpop.f32.mrb[0].mxu0
        %v389 = vadd.f32 %v305, %v388
        %v390 = vpop.f32.mrb[0].mxu0
        %v391 = vadd.f32 %v301, %v390
        %v392 = vpop.f32.mrb[0].mxu0
        %v393 = vadd.f32 %v305, %v392
        %394 = vmatprep.mubr.bf16.mxu0 0
        %395 = vmatmul.mubr.bf16.gmra.mrb[0].mxu0 %v337
        %v396 = vpop.f32.mrb[0].mxu0
        %v397 = vadd.f32 %v301, %v396
        %v398 = vpop.f32.mrb[0].mxu0
        %v399 = vadd.f32 %v305, %v398
        %v400 = vpop.f32.mrb[0].mxu0
        %v401 = vadd.f32 %v301, %v400
        %v402 = vpop.f32.mrb[0].mxu0
        %v403 = vadd.f32 %v305, %v402
        %404 = vmatprep.mubr.bf16.mxu0 0
        %405 = vmatmul.mubr.bf16.gmra.mrb[0].mxu0 %v340
        %v406 = vpop.f32.mrb[0].mxu0
        %v407 = vadd.f32 %v301, %v406
        %v408 = vpop.f32.mrb[0].mxu0
        %v409 = vadd.f32 %v305, %v408
        %v410 = vpop.f32.mrb[0].mxu0
        %v411 = vadd.f32 %v301, %v410
        %v412 = vpop.f32.mrb[0].mxu0
        %v413 = vadd.f32 %v305, %v412
        %414 = vdwg.mxu0
        %415 = vmatprep.subr.bf16.mxu0 0
        %416 = vmatpush1.bf16.msra.mxu0 %v325
        %417 = vmatprep.subr.bf16.mxu0 0
        %418 = vmatpush1.bf16.msra.mxu0 0
        %419 = vmatprep.subr.bf16.mxu0 0
        %420 = vmatpush1.bf16.msra.mxu0 0
        %421 = vmatprep.subr.bf16.mxu0 0
        %422 = vmatpush1.bf16.msra.mxu0 0
        %423 = vmatprep.subr.bf16.mxu0 0
        %424 = vmatpush1.bf16.msra.mxu0 0
        %425 = vmatprep.subr.bf16.mxu0 0
        %426 = vmatpush1.bf16.msra.mxu0 0
        %427 = vmatprep.subr.bf16.mxu0 0
        %428 = vmatpush1.bf16.msra.mxu0 0
        %429 = vmatprep.subr.bf16.mxu0 0
        %430 = vmatpush1.bf16.msra.mxu0 0
        %431 = vmatprep.subr.bf16.mxu0 0
        %432 = vmatpush1.bf16.msra.mxu0 0
        %433 = vmatprep.subr.bf16.mxu0 0
        %434 = vmatpush1.bf16.msra.mxu0 0
        %435 = vmatprep.subr.bf16.mxu0 0
        %436 = vmatpush1.bf16.msra.mxu0 0
        %437 = vmatprep.subr.bf16.mxu0 0
        %438 = vmatpush1.bf16.msra.mxu0 0
        %439 = vmatprep.subr.bf16.mxu0 0
        %440 = vmatpush1.bf16.msra.mxu0 0
        %441 = vmatprep.subr.bf16.mxu0 0
        %442 = vmatpush1.bf16.msra.mxu0 0
        %443 = vmatprep.subr.bf16.mxu0 0
        %444 = vmatpush1.bf16.msra.mxu0 0
        %445 = vmatprep.subr.bf16.mxu0 0
        %446 = vmatpush1.bf16.msra.mxu0 0
        %447 = vmatprep.mubr.bf16.mxu0 0
        %448 = vmatmul.mubr.bf16.gmra.mrb[0].mxu0 %v331
        %v449 = vpop.f32.mrb[0].mxu0
        %v450 = vadd.f32 %v309, %v449
        %v451 = vpop.f32.mrb[0].mxu0
        %v452 = vpop.f32.mrb[0].mxu0
        %v453 = vadd.f32 %v309, %v452
        %v454 = vpop.f32.mrb[0].mxu0
        %455 = vmatprep.mubr.bf16.mxu0 0
        %456 = vmatmul.mubr.bf16.gmra.mrb[0].mxu0 %v334
        %v457 = vpop.f32.mrb[0].mxu0
        %v458 = vadd.f32 %v309, %v457
        %v459 = vpop.f32.mrb[0].mxu0
        %v460 = vpop.f32.mrb[0].mxu0
        %v461 = vadd.f32 %v309, %v460
        %v462 = vpop.f32.mrb[0].mxu0
        %463 = vmatprep.mubr.bf16.mxu0 0
        %464 = vmatmul.mubr.bf16.gmra.mrb[0].mxu0 %v337
        %v465 = vpop.f32.mrb[0].mxu0
        %v466 = vadd.f32 %v309, %v465
        %v467 = vpop.f32.mrb[0].mxu0
        %v468 = vpop.f32.mrb[0].mxu0
        %v469 = vadd.f32 %v309, %v468
        %v470 = vpop.f32.mrb[0].mxu0
        %471 = vmatprep.mubr.bf16.mxu0 0
        %472 = vmatmul.mubr.bf16.gmra.mrb[0].mxu0 %v340
        %v473 = vpop.f32.mrb[0].mxu0
        %v474 = vadd.f32 %v309, %v473
        %v475 = vpop.f32.mrb[0].mxu0
        %v476 = vpop.f32.mrb[0].mxu0
        %v477 = vadd.f32 %v309, %v476
        %v478 = vpop.f32.mrb[0].mxu0
        %479 = vdwg.mxu0
        %v480 = vld [vmem:[%s2] sm:$0xff]
        %v481 = vld [vmem:[%s2 + $0x8] sm:$0xf]
        %v482 = vld [vmem:[%s2 + $0xc] sm:$0xff]
        %v483 = vld [vmem:[%s2 + $0x14] sm:$0xf]
        %v484 = vld [vmem:[%s2 + $0x18] sm:$0xff]
        %v485 = vld [vmem:[%s2 + $0x20] sm:$0xf]
        %v486 = vld [vmem:[%s2 + $0x24] sm:$0xff]
        %v487 = vld [vmem:[%s2 + $0x2c] sm:$0xf]
        %v488 = vld [vmem:[%s4] sm:$0x7]
        %v490 = vlaneseq
        %v491 = vshrl.u32 %v490, 7
        %v492 = vsub.s32 0, %v491
        %v493 = vrot.slane %v488, %v492
        %v494 = vlaneseq
        %v495 = vshrl.u32 %v494, 7
        %v496 = vsub.s32 1, %v495
        %v497 = vrot.slane %v488, %v496
        %v498 = vlaneseq
        %v499 = vshrl.u32 %v498, 7
        %v500 = vsub.s32 2, %v499
        %v501 = vrot.slane %v488, %v500
        %v513 = vunpack.c.l.b16 %v480
        %v514 = vunpack.c.h.b16 %v480
        %v515 = vunpack.c.l.b16 %v481
        %v516 = vunpack.c.l.b16 %v482
        %v517 = vunpack.c.h.b16 %v482
        %v518 = vunpack.c.l.b16 %v483
        %v519 = vunpack.c.l.b16 %v484
        %v520 = vunpack.c.h.b16 %v484
        %v521 = vunpack.c.l.b16 %v485
        %v522 = vunpack.c.l.b16 %v486
        %v523 = vunpack.c.h.b16 %v486
        %v524 = vunpack.c.l.b16 %v487
        %v525 = vpack.c.b16 %v516, %v513
        %v526 = vpack.c.b16 %v517, %v514
        %v527 = vpack.c.b16 %v518, %v515
        %v528 = vpack.c.b16 %v522, %v519
        %v529 = vpack.c.b16 %v523, %v520
        %v530 = vpack.c.b16 %v524, %v521
        %vm537 = vcmask 261120
        %v539 = vsel %vm537, 0, 0
        %541 = vmatprep.subr.bf16.mxu0 %v526
        %542 = vmatpush1.bf16.msra.mxu0 %v525
        %543 = vmatprep.subr.bf16.mxu0 %v529
        %544 = vmatpush1.bf16.msra.mxu0 %v528
        %545 = vmatprep.subr.bf16.mxu0 0
        %546 = vmatpush1.bf16.msra.mxu0 0
        %547 = vmatprep.subr.bf16.mxu0 0
        %548 = vmatpush1.bf16.msra.mxu0 0
        %549 = vmatprep.subr.bf16.mxu0 0
        %550 = vmatpush1.bf16.msra.mxu0 0
        %551 = vmatprep.subr.bf16.mxu0 0
        %552 = vmatpush1.bf16.msra.mxu0 0
        %553 = vmatprep.subr.bf16.mxu0 0
        %554 = vmatpush1.bf16.msra.mxu0 0
        %555 = vmatprep.subr.bf16.mxu0 0
        %556 = vmatpush1.bf16.msra.mxu0 0
        %557 = vmatprep.subr.bf16.mxu0 0
        %558 = vmatpush1.bf16.msra.mxu0 0
        %559 = vmatprep.subr.bf16.mxu0 0
        %560 = vmatpush1.bf16.msra.mxu0 0
        %561 = vmatprep.subr.bf16.mxu0 0
        %562 = vmatpush1.bf16.msra.mxu0 0
        %563 = vmatprep.subr.bf16.mxu0 0
        %564 = vmatpush1.bf16.msra.mxu0 0
        %565 = vmatprep.subr.bf16.mxu0 0
        %566 = vmatpush1.bf16.msra.mxu0 0
        %567 = vmatprep.subr.bf16.mxu0 0
        %568 = vmatpush1.bf16.msra.mxu0 0
        %569 = vmatprep.subr.bf16.mxu0 0
        %570 = vmatpush1.bf16.msra.mxu0 0
        %571 = vmatprep.subr.bf16.mxu0 0
        %572 = vmatpush1.bf16.msra.mxu0 0
        %573 = vmatprep.mubr.bf16.mxu0 0
        %574 = vmatmul.mubr.bf16.gmra.mrb[0].mxu0 %v539
        %v575 = vpop.f32.mrb[0].mxu0
        %v576 = vadd.f32 %v493, %v575
        %v577 = vpop.f32.mrb[0].mxu0
        %v578 = vadd.f32 %v497, %v577
        %v579 = vpop.f32.mrb[0].mxu0
        %v580 = vpop.f32.mrb[0].mxu0
        %581 = vdwg.mxu0
        %582 = vmatprep.subr.bf16.mxu0 0
        %583 = vmatpush1.bf16.msra.mxu0 %v527
        %584 = vmatprep.subr.bf16.mxu0 0
        %585 = vmatpush1.bf16.msra.mxu0 %v530
        %586 = vmatprep.subr.bf16.mxu0 0
        %587 = vmatpush1.bf16.msra.mxu0 0
        %588 = vmatprep.subr.bf16.mxu0 0
        %589 = vmatpush1.bf16.msra.mxu0 0
        %590 = vmatprep.subr.bf16.mxu0 0
        %591 = vmatpush1.bf16.msra.mxu0 0
        %592 = vmatprep.subr.bf16.mxu0 0
        %593 = vmatpush1.bf16.msra.mxu0 0
        %594 = vmatprep.subr.bf16.mxu0 0
        %595 = vmatpush1.bf16.msra.mxu0 0
        %596 = vmatprep.subr.bf16.mxu0 0
        %597 = vmatpush1.bf16.msra.mxu0 0
        %598 = vmatprep.subr.bf16.mxu0 0
        %599 = vmatpush1.bf16.msra.mxu0 0
        %600 = vmatprep.subr.bf16.mxu0 0
        %601 = vmatpush1.bf16.msra.mxu0 0
        %602 = vmatprep.subr.bf16.mxu0 0
        %603 = vmatpush1.bf16.msra.mxu0 0
        %604 = vmatprep.subr.bf16.mxu0 0
        %605 = vmatpush1.bf16.msra.mxu0 0
        %606 = vmatprep.subr.bf16.mxu0 0
        %607 = vmatpush1.bf16.msra.mxu0 0
        %608 = vmatprep.subr.bf16.mxu0 0
        %609 = vmatpush1.bf16.msra.mxu0 0
        %610 = vmatprep.subr.bf16.mxu0 0
        %611 = vmatpush1.bf16.msra.mxu0 0
        %612 = vmatprep.subr.bf16.mxu0 0
        %613 = vmatpush1.bf16.msra.mxu0 0
        %614 = vmatprep.mubr.bf16.mxu0 0
        %615 = vmatmul.mubr.bf16.gmra.mrb[0].mxu0 %v539
        %v616 = vpop.f32.mrb[0].mxu0
        %v617 = vadd.f32 %v501, %v616
        %v618 = vpop.f32.mrb[0].mxu0
        %v619 = vpop.f32.mrb[0].mxu0
        %v620 = vpop.f32.mrb[0].mxu0
        %621 = vdwg.mxu0
        %v622 = vadd.f32 %v377, %v576
        %v623 = vadd.f32 %v379, %v578
        %v624 = vxor.u32 %v622, 2147483648
        %v625 = vxor.u32 %v623, 2147483648
        %v626 = vmul.f32 %v624, 1.442695
        %v627 = vpow.pop %v626
        %v628 = vmul.f32 %v625, 1.442695
        %v629 = vpow.pop %v628
        %v630 = vadd.f32 %v627, 1.0
        %v631 = vadd.f32 %v629, 1.0
        %v632 = vrcp.pop %v630
        %v633 = vmul.f32 1.0, %v632
        %v634 = vrcp.pop %v631
        %v635 = vmul.f32 1.0, %v634
        %v636 = vmul.f32 %v633, %v617
        %v637 = vadd.f32 %v450, %v636
        %v638 = vtanh.pop %v637
        %v639 = vsub.f32 1.0, %v635
        %v640 = vmul.f32 %v639, %v638
        %v641 = vmul.f32 %v635, 0.0
        %v642 = vadd.f32 %v640, %v641
        %v643 = vpack.c.bf16 %v642, %v642
        %v645 = vsel %vm537, %v643, 0
        %647 = vmatprep.subr.bf16.mxu0 %v526
        %648 = vmatpush1.bf16.msra.mxu0 %v525
        %649 = vmatprep.subr.bf16.mxu0 %v529
        %650 = vmatpush1.bf16.msra.mxu0 %v528
        %651 = vmatprep.subr.bf16.mxu0 0
        %652 = vmatpush1.bf16.msra.mxu0 0
        %653 = vmatprep.subr.bf16.mxu0 0
        %654 = vmatpush1.bf16.msra.mxu0 0
        %655 = vmatprep.subr.bf16.mxu0 0
        %656 = vmatpush1.bf16.msra.mxu0 0
        %657 = vmatprep.subr.bf16.mxu0 0
        %658 = vmatpush1.bf16.msra.mxu0 0
        %659 = vmatprep.subr.bf16.mxu0 0
        %660 = vmatpush1.bf16.msra.mxu0 0
        %661 = vmatprep.subr.bf16.mxu0 0
        %662 = vmatpush1.bf16.msra.mxu0 0
        %663 = vmatprep.subr.bf16.mxu0 0
        %664 = vmatpush1.bf16.msra.mxu0 0
        %665 = vmatprep.subr.bf16.mxu0 0
        %666 = vmatpush1.bf16.msra.mxu0 0
        %667 = vmatprep.subr.bf16.mxu0 0
        %668 = vmatpush1.bf16.msra.mxu0 0
        %669 = vmatprep.subr.bf16.mxu0 0
        %670 = vmatpush1.bf16.msra.mxu0 0
        %671 = vmatprep.subr.bf16.mxu0 0
        %672 = vmatpush1.bf16.msra.mxu0 0
        %673 = vmatprep.subr.bf16.mxu0 0
        %674 = vmatpush1.bf16.msra.mxu0 0
        %675 = vmatprep.subr.bf16.mxu0 0
        %676 = vmatpush1.bf16.msra.mxu0 0
        %677 = vmatprep.subr.bf16.mxu0 0
        %678 = vmatpush1.bf16.msra.mxu0 0
        %679 = vmatprep.mubr.bf16.mxu0 0
        %680 = vmatmul.mubr.bf16.gmra.mrb[0].mxu0 %v645
        %v681 = vpop.f32.mrb[0].mxu0
        %v682 = vadd.f32 %v493, %v681
        %v683 = vpop.f32.mrb[0].mxu0
        %v684 = vadd.f32 %v497, %v683
        %v685 = vpop.f32.mrb[0].mxu0
        %v686 = vpop.f32.mrb[0].mxu0
        %687 = vdwg.mxu0
        %688 = vmatprep.subr.bf16.mxu0 0
        %689 = vmatpush1.bf16.msra.mxu0 %v527
        %690 = vmatprep.subr.bf16.mxu0 0
        %691 = vmatpush1.bf16.msra.mxu0 %v530
        %692 = vmatprep.subr.bf16.mxu0 0
        %693 = vmatpush1.bf16.msra.mxu0 0
        %694 = vmatprep.subr.bf16.mxu0 0
        %695 = vmatpush1.bf16.msra.mxu0 0
        %696 = vmatprep.subr.bf16.mxu0 0
        %697 = vmatpush1.bf16.msra.mxu0 0
        %698 = vmatprep.subr.bf16.mxu0 0
        %699 = vmatpush1.bf16.msra.mxu0 0
        %700 = vmatprep.subr.bf16.mxu0 0
        %701 = vmatpush1.bf16.msra.mxu0 0
        %702 = vmatprep.subr.bf16.mxu0 0
        %703 = vmatpush1.bf16.msra.mxu0 0
        %704 = vmatprep.subr.bf16.mxu0 0
        %705 = vmatpush1.bf16.msra.mxu0 0
        %706 = vmatprep.subr.bf16.mxu0 0
        %707 = vmatpush1.bf16.msra.mxu0 0
        %708 = vmatprep.subr.bf16.mxu0 0
        %709 = vmatpush1.bf16.msra.mxu0 0
        %710 = vmatprep.subr.bf16.mxu0 0
        %711 = vmatpush1.bf16.msra.mxu0 0
        %712 = vmatprep.subr.bf16.mxu0 0
        %713 = vmatpush1.bf16.msra.mxu0 0
        %714 = vmatprep.subr.bf16.mxu0 0
        %715 = vmatpush1.bf16.msra.mxu0 0
        %716 = vmatprep.subr.bf16.mxu0 0
        %717 = vmatpush1.bf16.msra.mxu0 0
        %718 = vmatprep.subr.bf16.mxu0 0
        %719 = vmatpush1.bf16.msra.mxu0 0
        %720 = vmatprep.mubr.bf16.mxu0 0
        %721 = vmatmul.mubr.bf16.gmra.mrb[0].mxu0 %v645
        %v722 = vpop.f32.mrb[0].mxu0
        %v723 = vadd.f32 %v501, %v722
        %v724 = vpop.f32.mrb[0].mxu0
        %v725 = vpop.f32.mrb[0].mxu0
        %v726 = vpop.f32.mrb[0].mxu0
        %727 = vdwg.mxu0
        %v728 = vadd.f32 %v381, %v682
        %v729 = vadd.f32 %v383, %v684
        %v730 = vxor.u32 %v728, 2147483648
        %v731 = vxor.u32 %v729, 2147483648
        %v732 = vmul.f32 %v730, 1.442695
        %v733 = vpow.pop %v732
        %v734 = vmul.f32 %v731, 1.442695
        %v735 = vpow.pop %v734
        %v736 = vadd.f32 %v733, 1.0
        %v737 = vadd.f32 %v735, 1.0
        %v738 = vrcp.pop %v736
        %v739 = vmul.f32 1.0, %v738
        %v740 = vrcp.pop %v737
        %v741 = vmul.f32 1.0, %v740
        %v742 = vmul.f32 %v739, %v723
        %v743 = vadd.f32 %v453, %v742
        %v744 = vtanh.pop %v743
        %v745 = vsub.f32 1.0, %v741
        %v746 = vmul.f32 %v745, %v744
        %v747 = vmul.f32 %v741, %v642
        %v748 = vadd.f32 %v746, %v747
        %v749 = vpack.c.bf16 %v748, %v748
        %v751 = vsel %vm537, %v749, 0
        %753 = vmatprep.subr.bf16.mxu0 %v526
        %754 = vmatpush1.bf16.msra.mxu0 %v525
        %755 = vmatprep.subr.bf16.mxu0 %v529
        %756 = vmatpush1.bf16.msra.mxu0 %v528
        %757 = vmatprep.subr.bf16.mxu0 0
        %758 = vmatpush1.bf16.msra.mxu0 0
        %759 = vmatprep.subr.bf16.mxu0 0
        %760 = vmatpush1.bf16.msra.mxu0 0
        %761 = vmatprep.subr.bf16.mxu0 0
        %762 = vmatpush1.bf16.msra.mxu0 0
        %763 = vmatprep.subr.bf16.mxu0 0
        %764 = vmatpush1.bf16.msra.mxu0 0
        %765 = vmatprep.subr.bf16.mxu0 0
        %766 = vmatpush1.bf16.msra.mxu0 0
        %767 = vmatprep.subr.bf16.mxu0 0
        %768 = vmatpush1.bf16.msra.mxu0 0
        %769 = vmatprep.subr.bf16.mxu0 0
        %770 = vmatpush1.bf16.msra.mxu0 0
        %771 = vmatprep.subr.bf16.mxu0 0
        %772 = vmatpush1.bf16.msra.mxu0 0
        %773 = vmatprep.subr.bf16.mxu0 0
        %774 = vmatpush1.bf16.msra.mxu0 0
        %775 = vmatprep.subr.bf16.mxu0 0
        %776 = vmatpush1.bf16.msra.mxu0 0
        %777 = vmatprep.subr.bf16.mxu0 0
        %778 = vmatpush1.bf16.msra.mxu0 0
        %779 = vmatprep.subr.bf16.mxu0 0
        %780 = vmatpush1.bf16.msra.mxu0 0
        %781 = vmatprep.subr.bf16.mxu0 0
        %782 = vmatpush1.bf16.msra.mxu0 0
        %783 = vmatprep.subr.bf16.mxu0 0
        %784 = vmatpush1.bf16.msra.mxu0 0
        %785 = vmatprep.mubr.bf16.mxu0 0
        %786 = vmatmul.mubr.bf16.gmra.mrb[0].mxu0 %v751
        %v787 = vpop.f32.mrb[0].mxu0
        %v788 = vadd.f32 %v493, %v787
        %v789 = vpop.f32.mrb[0].mxu0
        %v790 = vadd.f32 %v497, %v789
        %v791 = vpop.f32.mrb[0].mxu0
        %v792 = vpop.f32.mrb[0].mxu0
        %793 = vdwg.mxu0
        %794 = vmatprep.subr.bf16.mxu0 0
        %795 = vmatpush1.bf16.msra.mxu0 %v527
        %796 = vmatprep.subr.bf16.mxu0 0
        %797 = vmatpush1.bf16.msra.mxu0 %v530
        %798 = vmatprep.subr.bf16.mxu0 0
        %799 = vmatpush1.bf16.msra.mxu0 0
        %800 = vmatprep.subr.bf16.mxu0 0
        %801 = vmatpush1.bf16.msra.mxu0 0
        %802 = vmatprep.subr.bf16.mxu0 0
        %803 = vmatpush1.bf16.msra.mxu0 0
        %804 = vmatprep.subr.bf16.mxu0 0
        %805 = vmatpush1.bf16.msra.mxu0 0
        %806 = vmatprep.subr.bf16.mxu0 0
        %807 = vmatpush1.bf16.msra.mxu0 0
        %808 = vmatprep.subr.bf16.mxu0 0
        %809 = vmatpush1.bf16.msra.mxu0 0
        %810 = vmatprep.subr.bf16.mxu0 0
        %811 = vmatpush1.bf16.msra.mxu0 0
        %812 = vmatprep.subr.bf16.mxu0 0
        %813 = vmatpush1.bf16.msra.mxu0 0
        %814 = vmatprep.subr.bf16.mxu0 0
        %815 = vmatpush1.bf16.msra.mxu0 0
        %816 = vmatprep.subr.bf16.mxu0 0
        %817 = vmatpush1.bf16.msra.mxu0 0
        %818 = vmatprep.subr.bf16.mxu0 0
        %819 = vmatpush1.bf16.msra.mxu0 0
        %820 = vmatprep.subr.bf16.mxu0 0
        %821 = vmatpush1.bf16.msra.mxu0 0
        %822 = vmatprep.subr.bf16.mxu0 0
        %823 = vmatpush1.bf16.msra.mxu0 0
        %824 = vmatprep.subr.bf16.mxu0 0
        %825 = vmatpush1.bf16.msra.mxu0 0
        %826 = vmatprep.mubr.bf16.mxu0 0
        %827 = vmatmul.mubr.bf16.gmra.mrb[0].mxu0 %v751
        %v828 = vpop.f32.mrb[0].mxu0
        %v829 = vadd.f32 %v501, %v828
        %v830 = vpop.f32.mrb[0].mxu0
        %v831 = vpop.f32.mrb[0].mxu0
        %v832 = vpop.f32.mrb[0].mxu0
        %833 = vdwg.mxu0
        %v834 = vadd.f32 %v387, %v788
        %v835 = vadd.f32 %v389, %v790
        %v836 = vxor.u32 %v834, 2147483648
        %v837 = vxor.u32 %v835, 2147483648
        %v838 = vmul.f32 %v836, 1.442695
        %v839 = vpow.pop %v838
        %v840 = vmul.f32 %v837, 1.442695
        %v841 = vpow.pop %v840
        %v842 = vadd.f32 %v839, 1.0
        %v843 = vadd.f32 %v841, 1.0
        %v844 = vrcp.pop %v842
        %v845 = vmul.f32 1.0, %v844
        %v846 = vrcp.pop %v843
        %v847 = vmul.f32 1.0, %v846
        %v848 = vmul.f32 %v845, %v829
        %v849 = vadd.f32 %v458, %v848
        %v850 = vtanh.pop %v849
        %v851 = vsub.f32 1.0, %v847
        %v852 = vmul.f32 %v851, %v850
        %v853 = vmul.f32 %v847, %v748
        %v854 = vadd.f32 %v852, %v853
        %v855 = vpack.c.bf16 %v854, %v854
        %v857 = vsel %vm537, %v855, 0
        %859 = vmatprep.subr.bf16.mxu0 %v526
        %860 = vmatpush1.bf16.msra.mxu0 %v525
        %861 = vmatprep.subr.bf16.mxu0 %v529
        %862 = vmatpush1.bf16.msra.mxu0 %v528
        %863 = vmatprep.subr.bf16.mxu0 0
        %864 = vmatpush1.bf16.msra.mxu0 0
        %865 = vmatprep.subr.bf16.mxu0 0
        %866 = vmatpush1.bf16.msra.mxu0 0
        %867 = vmatprep.subr.bf16.mxu0 0
        %868 = vmatpush1.bf16.msra.mxu0 0
        %869 = vmatprep.subr.bf16.mxu0 0
        %870 = vmatpush1.bf16.msra.mxu0 0
        %871 = vmatprep.subr.bf16.mxu0 0
        %872 = vmatpush1.bf16.msra.mxu0 0
        %873 = vmatprep.subr.bf16.mxu0 0
        %874 = vmatpush1.bf16.msra.mxu0 0
        %875 = vmatprep.subr.bf16.mxu0 0
        %876 = vmatpush1.bf16.msra.mxu0 0
        %877 = vmatprep.subr.bf16.mxu0 0
        %878 = vmatpush1.bf16.msra.mxu0 0
        %879 = vmatprep.subr.bf16.mxu0 0
        %880 = vmatpush1.bf16.msra.mxu0 0
        %881 = vmatprep.subr.bf16.mxu0 0
        %882 = vmatpush1.bf16.msra.mxu0 0
        %883 = vmatprep.subr.bf16.mxu0 0
        %884 = vmatpush1.bf16.msra.mxu0 0
        %885 = vmatprep.subr.bf16.mxu0 0
        %886 = vmatpush1.bf16.msra.mxu0 0
        %887 = vmatprep.subr.bf16.mxu0 0
        %888 = vmatpush1.bf16.msra.mxu0 0
        %889 = vmatprep.subr.bf16.mxu0 0
        %890 = vmatpush1.bf16.msra.mxu0 0
        %891 = vmatprep.mubr.bf16.mxu0 0
        %892 = vmatmul.mubr.bf16.gmra.mrb[0].mxu0 %v857
        %v893 = vpop.f32.mrb[0].mxu0
        %v894 = vadd.f32 %v493, %v893
        %v895 = vpop.f32.mrb[0].mxu0
        %v896 = vadd.f32 %v497, %v895
        %v897 = vpop.f32.mrb[0].mxu0
        %v898 = vpop.f32.mrb[0].mxu0
        %899 = vdwg.mxu0
        %900 = vmatprep.subr.bf16.mxu0 0
        %901 = vmatpush1.bf16.msra.mxu0 %v527
        %902 = vmatprep.subr.bf16.mxu0 0
        %903 = vmatpush1.bf16.msra.mxu0 %v530
        %904 = vmatprep.subr.bf16.mxu0 0
        %905 = vmatpush1.bf16.msra.mxu0 0
        %906 = vmatprep.subr.bf16.mxu0 0
        %907 = vmatpush1.bf16.msra.mxu0 0
        %908 = vmatprep.subr.bf16.mxu0 0
        %909 = vmatpush1.bf16.msra.mxu0 0
        %910 = vmatprep.subr.bf16.mxu0 0
        %911 = vmatpush1.bf16.msra.mxu0 0
        %912 = vmatprep.subr.bf16.mxu0 0
        %913 = vmatpush1.bf16.msra.mxu0 0
        %914 = vmatprep.subr.bf16.mxu0 0
        %915 = vmatpush1.bf16.msra.mxu0 0
        %916 = vmatprep.subr.bf16.mxu0 0
        %917 = vmatpush1.bf16.msra.mxu0 0
        %918 = vmatprep.subr.bf16.mxu0 0
        %919 = vmatpush1.bf16.msra.mxu0 0
        %920 = vmatprep.subr.bf16.mxu0 0
        %921 = vmatpush1.bf16.msra.mxu0 0
        %922 = vmatprep.subr.bf16.mxu0 0
        %923 = vmatpush1.bf16.msra.mxu0 0
        %924 = vmatprep.subr.bf16.mxu0 0
        %925 = vmatpush1.bf16.msra.mxu0 0
        %926 = vmatprep.subr.bf16.mxu0 0
        %927 = vmatpush1.bf16.msra.mxu0 0
        %928 = vmatprep.subr.bf16.mxu0 0
        %929 = vmatpush1.bf16.msra.mxu0 0
        %930 = vmatprep.subr.bf16.mxu0 0
        %931 = vmatpush1.bf16.msra.mxu0 0
        %932 = vmatprep.mubr.bf16.mxu0 0
        %933 = vmatmul.mubr.bf16.gmra.mrb[0].mxu0 %v857
        %v934 = vpop.f32.mrb[0].mxu0
        %v935 = vadd.f32 %v501, %v934
        %v936 = vpop.f32.mrb[0].mxu0
        %v937 = vpop.f32.mrb[0].mxu0
        %v938 = vpop.f32.mrb[0].mxu0
        %939 = vdwg.mxu0
        %v940 = vadd.f32 %v391, %v894
        %v941 = vadd.f32 %v393, %v896
        %v942 = vxor.u32 %v940, 2147483648
        %v943 = vxor.u32 %v941, 2147483648
        %v944 = vmul.f32 %v942, 1.442695
        %v945 = vpow.pop %v944
        %v946 = vmul.f32 %v943, 1.442695
        %v947 = vpow.pop %v946
        %v948 = vadd.f32 %v945, 1.0
        %v949 = vadd.f32 %v947, 1.0
        %v950 = vrcp.pop %v948
        %v951 = vmul.f32 1.0, %v950
        %v952 = vrcp.pop %v949
        %v953 = vmul.f32 1.0, %v952
        %v954 = vmul.f32 %v951, %v935
        %v955 = vadd.f32 %v461, %v954
        %v956 = vtanh.pop %v955
        %v957 = vsub.f32 1.0, %v953
        %v958 = vmul.f32 %v957, %v956
        %v959 = vmul.f32 %v953, %v854
        %v960 = vadd.f32 %v958, %v959
        %v961 = vpack.c.bf16 %v960, %v960
        %v963 = vsel %vm537, %v961, 0
        %965 = vmatprep.subr.bf16.mxu0 %v526
        %966 = vmatpush1.bf16.msra.mxu0 %v525
        %967 = vmatprep.subr.bf16.mxu0 %v529
        %968 = vmatpush1.bf16.msra.mxu0 %v528
        %969 = vmatprep.subr.bf16.mxu0 0
        %970 = vmatpush1.bf16.msra.mxu0 0
        %971 = vmatprep.subr.bf16.mxu0 0
        %972 = vmatpush1.bf16.msra.mxu0 0
        %973 = vmatprep.subr.bf16.mxu0 0
        %974 = vmatpush1.bf16.msra.mxu0 0
        %975 = vmatprep.subr.bf16.mxu0 0
        %976 = vmatpush1.bf16.msra.mxu0 0
        %977 = vmatprep.subr.bf16.mxu0 0
        %978 = vmatpush1.bf16.msra.mxu0 0
        %979 = vmatprep.subr.bf16.mxu0 0
        %980 = vmatpush1.bf16.msra.mxu0 0
        %981 = vmatprep.subr.bf16.mxu0 0
        %982 = vmatpush1.bf16.msra.mxu0 0
        %983 = vmatprep.subr.bf16.mxu0 0
        %984 = vmatpush1.bf16.msra.mxu0 0
        %985 = vmatprep.subr.bf16.mxu0 0
        %986 = vmatpush1.bf16.msra.mxu0 0
        %987 = vmatprep.subr.bf16.mxu0 0
        %988 = vmatpush1.bf16.msra.mxu0 0
        %989 = vmatprep.subr.bf16.mxu0 0
        %990 = vmatpush1.bf16.msra.mxu0 0
        %991 = vmatprep.subr.bf16.mxu0 0
        %992 = vmatpush1.bf16.msra.mxu0 0
        %993 = vmatprep.subr.bf16.mxu0 0
        %994 = vmatpush1.bf16.msra.mxu0 0
        %995 = vmatprep.subr.bf16.mxu0 0
        %996 = vmatpush1.bf16.msra.mxu0 0
        %997 = vmatprep.mubr.bf16.mxu0 0
        %998 = vmatmul.mubr.bf16.gmra.mrb[0].mxu0 %v963
        %v999 = vpop.f32.mrb[0].mxu0
        %v1000 = vadd.f32 %v493, %v999
        %v1001 = vpop.f32.mrb[0].mxu0
        %v1002 = vadd.f32 %v497, %v1001
        %v1003 = vpop.f32.mrb[0].mxu0
        %v1004 = vpop.f32.mrb[0].mxu0
        %1005 = vdwg.mxu0
        %1006 = vmatprep.subr.bf16.mxu0 0
        %1007 = vmatpush1.bf16.msra.mxu0 %v527
        %1008 = vmatprep.subr.bf16.mxu0 0
        %1009 = vmatpush1.bf16.msra.mxu0 %v530
        %1010 = vmatprep.subr.bf16.mxu0 0
        %1011 = vmatpush1.bf16.msra.mxu0 0
        %1012 = vmatprep.subr.bf16.mxu0 0
        %1013 = vmatpush1.bf16.msra.mxu0 0
        %1014 = vmatprep.subr.bf16.mxu0 0
        %1015 = vmatpush1.bf16.msra.mxu0 0
        %1016 = vmatprep.subr.bf16.mxu0 0
        %1017 = vmatpush1.bf16.msra.mxu0 0
        %1018 = vmatprep.subr.bf16.mxu0 0
        %1019 = vmatpush1.bf16.msra.mxu0 0
        %1020 = vmatprep.subr.bf16.mxu0 0
        %1021 = vmatpush1.bf16.msra.mxu0 0
        %1022 = vmatprep.subr.bf16.mxu0 0
        %1023 = vmatpush1.bf16.msra.mxu0 0
        %1024 = vmatprep.subr.bf16.mxu0 0
        %1025 = vmatpush1.bf16.msra.mxu0 0
        %1026 = vmatprep.subr.bf16.mxu0 0
        %1027 = vmatpush1.bf16.msra.mxu0 0
        %1028 = vmatprep.subr.bf16.mxu0 0
        %1029 = vmatpush1.bf16.msra.mxu0 0
        %1030 = vmatprep.subr.bf16.mxu0 0
        %1031 = vmatpush1.bf16.msra.mxu0 0
        %1032 = vmatprep.subr.bf16.mxu0 0
        %1033 = vmatpush1.bf16.msra.mxu0 0
        %1034 = vmatprep.subr.bf16.mxu0 0
        %1035 = vmatpush1.bf16.msra.mxu0 0
        %1036 = vmatprep.subr.bf16.mxu0 0
        %1037 = vmatpush1.bf16.msra.mxu0 0
        %1038 = vmatprep.mubr.bf16.mxu0 0
        %1039 = vmatmul.mubr.bf16.gmra.mrb[0].mxu0 %v963
        %v1040 = vpop.f32.mrb[0].mxu0
        %v1041 = vadd.f32 %v501, %v1040
        %v1042 = vpop.f32.mrb[0].mxu0
        %v1043 = vpop.f32.mrb[0].mxu0
        %v1044 = vpop.f32.mrb[0].mxu0
        %1045 = vdwg.mxu0
        %v1046 = vadd.f32 %v397, %v1000
        %v1047 = vadd.f32 %v399, %v1002
        %v1048 = vxor.u32 %v1046, 2147483648
        %v1049 = vxor.u32 %v1047, 2147483648
        %v1050 = vmul.f32 %v1048, 1.442695
        %v1051 = vpow.pop %v1050
        %v1052 = vmul.f32 %v1049, 1.442695
        %v1053 = vpow.pop %v1052
        %v1054 = vadd.f32 %v1051, 1.0
        %v1055 = vadd.f32 %v1053, 1.0
        %v1056 = vrcp.pop %v1054
        %v1057 = vmul.f32 1.0, %v1056
        %v1058 = vrcp.pop %v1055
        %v1059 = vmul.f32 1.0, %v1058
        %v1060 = vmul.f32 %v1057, %v1041
        %v1061 = vadd.f32 %v466, %v1060
        %v1062 = vtanh.pop %v1061
        %v1063 = vsub.f32 1.0, %v1059
        %v1064 = vmul.f32 %v1063, %v1062
        %v1065 = vmul.f32 %v1059, %v960
        %v1066 = vadd.f32 %v1064, %v1065
        %v1067 = vpack.c.bf16 %v1066, %v1066
        %v1069 = vsel %vm537, %v1067, 0
        %1071 = vmatprep.subr.bf16.mxu0 %v526
        %1072 = vmatpush1.bf16.msra.mxu0 %v525
        %1073 = vmatprep.subr.bf16.mxu0 %v529
        %1074 = vmatpush1.bf16.msra.mxu0 %v528
        %1075 = vmatprep.subr.bf16.mxu0 0
        %1076 = vmatpush1.bf16.msra.mxu0 0
        %1077 = vmatprep.subr.bf16.mxu0 0
        %1078 = vmatpush1.bf16.msra.mxu0 0
        %1079 = vmatprep.subr.bf16.mxu0 0
        %1080 = vmatpush1.bf16.msra.mxu0 0
        %1081 = vmatprep.subr.bf16.mxu0 0
        %1082 = vmatpush1.bf16.msra.mxu0 0
        %1083 = vmatprep.subr.bf16.mxu0 0
        %1084 = vmatpush1.bf16.msra.mxu0 0
        %1085 = vmatprep.subr.bf16.mxu0 0
        %1086 = vmatpush1.bf16.msra.mxu0 0
        %1087 = vmatprep.subr.bf16.mxu0 0
        %1088 = vmatpush1.bf16.msra.mxu0 0
        %1089 = vmatprep.subr.bf16.mxu0 0
        %1090 = vmatpush1.bf16.msra.mxu0 0
        %1091 = vmatprep.subr.bf16.mxu0 0
        %1092 = vmatpush1.bf16.msra.mxu0 0
        %1093 = vmatprep.subr.bf16.mxu0 0
        %1094 = vmatpush1.bf16.msra.mxu0 0
        %1095 = vmatprep.subr.bf16.mxu0 0
        %1096 = vmatpush1.bf16.msra.mxu0 0
        %1097 = vmatprep.subr.bf16.mxu0 0
        %1098 = vmatpush1.bf16.msra.mxu0 0
        %1099 = vmatprep.subr.bf16.mxu0 0
        %1100 = vmatpush1.bf16.msra.mxu0 0
        %1101 = vmatprep.subr.bf16.mxu0 0
        %1102 = vmatpush1.bf16.msra.mxu0 0
        %1103 = vmatprep.mubr.bf16.mxu0 0
        %1104 = vmatmul.mubr.bf16.gmra.mrb[0].mxu0 %v1069
        %v1105 = vpop.f32.mrb[0].mxu0
        %v1106 = vadd.f32 %v493, %v1105
        %v1107 = vpop.f32.mrb[0].mxu0
        %v1108 = vadd.f32 %v497, %v1107
        %v1109 = vpop.f32.mrb[0].mxu0
        %v1110 = vpop.f32.mrb[0].mxu0
        %1111 = vdwg.mxu0
        %1112 = vmatprep.subr.bf16.mxu0 0
        %1113 = vmatpush1.bf16.msra.mxu0 %v527
        %1114 = vmatprep.subr.bf16.mxu0 0
        %1115 = vmatpush1.bf16.msra.mxu0 %v530
        %1116 = vmatprep.subr.bf16.mxu0 0
        %1117 = vmatpush1.bf16.msra.mxu0 0
        %1118 = vmatprep.subr.bf16.mxu0 0
        %1119 = vmatpush1.bf16.msra.mxu0 0
        %1120 = vmatprep.subr.bf16.mxu0 0
        %1121 = vmatpush1.bf16.msra.mxu0 0
        %1122 = vmatprep.subr.bf16.mxu0 0
        %1123 = vmatpush1.bf16.msra.mxu0 0
        %1124 = vmatprep.subr.bf16.mxu0 0
        %1125 = vmatpush1.bf16.msra.mxu0 0
        %1126 = vmatprep.subr.bf16.mxu0 0
        %1127 = vmatpush1.bf16.msra.mxu0 0
        %1128 = vmatprep.subr.bf16.mxu0 0
        %1129 = vmatpush1.bf16.msra.mxu0 0
        %1130 = vmatprep.subr.bf16.mxu0 0
        %1131 = vmatpush1.bf16.msra.mxu0 0
        %1132 = vmatprep.subr.bf16.mxu0 0
        %1133 = vmatpush1.bf16.msra.mxu0 0
        %1134 = vmatprep.subr.bf16.mxu0 0
        %1135 = vmatpush1.bf16.msra.mxu0 0
        %1136 = vmatprep.subr.bf16.mxu0 0
        %1137 = vmatpush1.bf16.msra.mxu0 0
        %1138 = vmatprep.subr.bf16.mxu0 0
        %1139 = vmatpush1.bf16.msra.mxu0 0
        %1140 = vmatprep.subr.bf16.mxu0 0
        %1141 = vmatpush1.bf16.msra.mxu0 0
        %1142 = vmatprep.subr.bf16.mxu0 0
        %1143 = vmatpush1.bf16.msra.mxu0 0
        %1144 = vmatprep.mubr.bf16.mxu0 0
        %1145 = vmatmul.mubr.bf16.gmra.mrb[0].mxu0 %v1069
        %v1146 = vpop.f32.mrb[0].mxu0
        %v1147 = vadd.f32 %v501, %v1146
        %v1148 = vpop.f32.mrb[0].mxu0
        %v1149 = vpop.f32.mrb[0].mxu0
        %v1150 = vpop.f32.mrb[0].mxu0
        %1151 = vdwg.mxu0
        %v1152 = vadd.f32 %v401, %v1106
        %v1153 = vadd.f32 %v403, %v1108
        %v1154 = vxor.u32 %v1152, 2147483648
        %v1155 = vxor.u32 %v1153, 2147483648
        %v1156 = vmul.f32 %v1154, 1.442695
        %v1157 = vpow.pop %v1156
        %v1158 = vmul.f32 %v1155, 1.442695
        %v1159 = vpow.pop %v1158
        %v1160 = vadd.f32 %v1157, 1.0
        %v1161 = vadd.f32 %v1159, 1.0
        %v1162 = vrcp.pop %v1160
        %v1163 = vmul.f32 1.0, %v1162
        %v1164 = vrcp.pop %v1161
        %v1165 = vmul.f32 1.0, %v1164
        %v1166 = vmul.f32 %v1163, %v1147
        %v1167 = vadd.f32 %v469, %v1166
        %v1168 = vtanh.pop %v1167
        %v1169 = vsub.f32 1.0, %v1165
        %v1170 = vmul.f32 %v1169, %v1168
        %v1171 = vmul.f32 %v1165, %v1066
        %v1172 = vadd.f32 %v1170, %v1171
        %v1173 = vpack.c.bf16 %v1172, %v1172
        %v1175 = vsel %vm537, %v1173, 0
        %1177 = vmatprep.subr.bf16.mxu0 %v526
        %1178 = vmatpush1.bf16.msra.mxu0 %v525
        %1179 = vmatprep.subr.bf16.mxu0 %v529
        %1180 = vmatpush1.bf16.msra.mxu0 %v528
        %1181 = vmatprep.subr.bf16.mxu0 0
        %1182 = vmatpush1.bf16.msra.mxu0 0
        %1183 = vmatprep.subr.bf16.mxu0 0
        %1184 = vmatpush1.bf16.msra.mxu0 0
        %1185 = vmatprep.subr.bf16.mxu0 0
        %1186 = vmatpush1.bf16.msra.mxu0 0
        %1187 = vmatprep.subr.bf16.mxu0 0
        %1188 = vmatpush1.bf16.msra.mxu0 0
        %1189 = vmatprep.subr.bf16.mxu0 0
        %1190 = vmatpush1.bf16.msra.mxu0 0
        %1191 = vmatprep.subr.bf16.mxu0 0
        %1192 = vmatpush1.bf16.msra.mxu0 0
        %1193 = vmatprep.subr.bf16.mxu0 0
        %1194 = vmatpush1.bf16.msra.mxu0 0
        %1195 = vmatprep.subr.bf16.mxu0 0
        %1196 = vmatpush1.bf16.msra.mxu0 0
        %1197 = vmatprep.subr.bf16.mxu0 0
        %1198 = vmatpush1.bf16.msra.mxu0 0
        %1199 = vmatprep.subr.bf16.mxu0 0
        %1200 = vmatpush1.bf16.msra.mxu0 0
        %1201 = vmatprep.subr.bf16.mxu0 0
        %1202 = vmatpush1.bf16.msra.mxu0 0
        %1203 = vmatprep.subr.bf16.mxu0 0
        %1204 = vmatpush1.bf16.msra.mxu0 0
        %1205 = vmatprep.subr.bf16.mxu0 0
        %1206 = vmatpush1.bf16.msra.mxu0 0
        %1207 = vmatprep.subr.bf16.mxu0 0
        %1208 = vmatpush1.bf16.msra.mxu0 0
        %1209 = vmatprep.mubr.bf16.mxu0 0
        %1210 = vmatmul.mubr.bf16.gmra.mrb[0].mxu0 %v1175
        %v1211 = vpop.f32.mrb[0].mxu0
        %v1212 = vadd.f32 %v493, %v1211
        %v1213 = vpop.f32.mrb[0].mxu0
        %v1214 = vadd.f32 %v497, %v1213
        %v1215 = vpop.f32.mrb[0].mxu0
        %v1216 = vpop.f32.mrb[0].mxu0
        %1217 = vdwg.mxu0
        %1218 = vmatprep.subr.bf16.mxu0 0
        %1219 = vmatpush1.bf16.msra.mxu0 %v527
        %1220 = vmatprep.subr.bf16.mxu0 0
        %1221 = vmatpush1.bf16.msra.mxu0 %v530
        %1222 = vmatprep.subr.bf16.mxu0 0
        %1223 = vmatpush1.bf16.msra.mxu0 0
        %1224 = vmatprep.subr.bf16.mxu0 0
        %1225 = vmatpush1.bf16.msra.mxu0 0
        %1226 = vmatprep.subr.bf16.mxu0 0
        %1227 = vmatpush1.bf16.msra.mxu0 0
        %1228 = vmatprep.subr.bf16.mxu0 0
        %1229 = vmatpush1.bf16.msra.mxu0 0
        %1230 = vmatprep.subr.bf16.mxu0 0
        %1231 = vmatpush1.bf16.msra.mxu0 0
        %1232 = vmatprep.subr.bf16.mxu0 0
        %1233 = vmatpush1.bf16.msra.mxu0 0
        %1234 = vmatprep.subr.bf16.mxu0 0
        %1235 = vmatpush1.bf16.msra.mxu0 0
        %1236 = vmatprep.subr.bf16.mxu0 0
        %1237 = vmatpush1.bf16.msra.mxu0 0
        %1238 = vmatprep.subr.bf16.mxu0 0
        %1239 = vmatpush1.bf16.msra.mxu0 0
        %1240 = vmatprep.subr.bf16.mxu0 0
        %1241 = vmatpush1.bf16.msra.mxu0 0
        %1242 = vmatprep.subr.bf16.mxu0 0
        %1243 = vmatpush1.bf16.msra.mxu0 0
        %1244 = vmatprep.subr.bf16.mxu0 0
        %1245 = vmatpush1.bf16.msra.mxu0 0
        %1246 = vmatprep.subr.bf16.mxu0 0
        %1247 = vmatpush1.bf16.msra.mxu0 0
        %1248 = vmatprep.subr.bf16.mxu0 0
        %1249 = vmatpush1.bf16.msra.mxu0 0
        %1250 = vmatprep.mubr.bf16.mxu0 0
        %1251 = vmatmul.mubr.bf16.gmra.mrb[0].mxu0 %v1175
        %v1252 = vpop.f32.mrb[0].mxu0
        %v1253 = vadd.f32 %v501, %v1252
        %v1254 = vpop.f32.mrb[0].mxu0
        %v1255 = vpop.f32.mrb[0].mxu0
        %v1256 = vpop.f32.mrb[0].mxu0
        %1257 = vdwg.mxu0
        %v1258 = vadd.f32 %v407, %v1212
        %v1259 = vadd.f32 %v409, %v1214
        %v1260 = vxor.u32 %v1258, 2147483648
        %v1261 = vxor.u32 %v1259, 2147483648
        %v1262 = vmul.f32 %v1260, 1.442695
        %v1263 = vpow.pop %v1262
        %v1264 = vmul.f32 %v1261, 1.442695
        %v1265 = vpow.pop %v1264
        %v1266 = vadd.f32 %v1263, 1.0
        %v1267 = vadd.f32 %v1265, 1.0
        %v1268 = vrcp.pop %v1266
        %v1269 = vmul.f32 1.0, %v1268
        %v1270 = vrcp.pop %v1267
        %v1271 = vmul.f32 1.0, %v1270
        %v1272 = vmul.f32 %v1269, %v1253
        %v1273 = vadd.f32 %v474, %v1272
        %v1274 = vtanh.pop %v1273
        %v1275 = vsub.f32 1.0, %v1271
        %v1276 = vmul.f32 %v1275, %v1274
        %v1277 = vmul.f32 %v1271, %v1172
        %v1278 = vadd.f32 %v1276, %v1277
        %v1279 = vpack.c.bf16 %v1278, %v1278
        %v1281 = vsel %vm537, %v1279, 0
        %1283 = vmatprep.subr.bf16.mxu0 %v526
        %1284 = vmatpush1.bf16.msra.mxu0 %v525
        %1285 = vmatprep.subr.bf16.mxu0 %v529
        %1286 = vmatpush1.bf16.msra.mxu0 %v528
        %1287 = vmatprep.subr.bf16.mxu0 0
        %1288 = vmatpush1.bf16.msra.mxu0 0
        %1289 = vmatprep.subr.bf16.mxu0 0
        %1290 = vmatpush1.bf16.msra.mxu0 0
        %1291 = vmatprep.subr.bf16.mxu0 0
        %1292 = vmatpush1.bf16.msra.mxu0 0
        %1293 = vmatprep.subr.bf16.mxu0 0
        %1294 = vmatpush1.bf16.msra.mxu0 0
        %1295 = vmatprep.subr.bf16.mxu0 0
        %1296 = vmatpush1.bf16.msra.mxu0 0
        %1297 = vmatprep.subr.bf16.mxu0 0
        %1298 = vmatpush1.bf16.msra.mxu0 0
        %1299 = vmatprep.subr.bf16.mxu0 0
        %1300 = vmatpush1.bf16.msra.mxu0 0
        %1301 = vmatprep.subr.bf16.mxu0 0
        %1302 = vmatpush1.bf16.msra.mxu0 0
        %1303 = vmatprep.subr.bf16.mxu0 0
        %1304 = vmatpush1.bf16.msra.mxu0 0
        %1305 = vmatprep.subr.bf16.mxu0 0
        %1306 = vmatpush1.bf16.msra.mxu0 0
        %1307 = vmatprep.subr.bf16.mxu0 0
        %1308 = vmatpush1.bf16.msra.mxu0 0
        %1309 = vmatprep.subr.bf16.mxu0 0
        %1310 = vmatpush1.bf16.msra.mxu0 0
        %1311 = vmatprep.subr.bf16.mxu0 0
        %1312 = vmatpush1.bf16.msra.mxu0 0
        %1313 = vmatprep.subr.bf16.mxu0 0
        %1314 = vmatpush1.bf16.msra.mxu0 0
        %1315 = vmatprep.mubr.bf16.mxu0 0
        %1316 = vmatmul.mubr.bf16.gmra.mrb[0].mxu0 %v1281
        %v1317 = vpop.f32.mrb[0].mxu0
        %v1318 = vadd.f32 %v493, %v1317
        %v1319 = vpop.f32.mrb[0].mxu0
        %v1320 = vadd.f32 %v497, %v1319
        %v1321 = vpop.f32.mrb[0].mxu0
        %v1322 = vpop.f32.mrb[0].mxu0
        %1323 = vdwg.mxu0
        %1324 = vmatprep.subr.bf16.mxu0 0
        %1325 = vmatpush1.bf16.msra.mxu0 %v527
        %1326 = vmatprep.subr.bf16.mxu0 0
        %1327 = vmatpush1.bf16.msra.mxu0 %v530
        %1328 = vmatprep.subr.bf16.mxu0 0
        %1329 = vmatpush1.bf16.msra.mxu0 0
        %1330 = vmatprep.subr.bf16.mxu0 0
        %1331 = vmatpush1.bf16.msra.mxu0 0
        %1332 = vmatprep.subr.bf16.mxu0 0
        %1333 = vmatpush1.bf16.msra.mxu0 0
        %1334 = vmatprep.subr.bf16.mxu0 0
        %1335 = vmatpush1.bf16.msra.mxu0 0
        %1336 = vmatprep.subr.bf16.mxu0 0
        %1337 = vmatpush1.bf16.msra.mxu0 0
        %1338 = vmatprep.subr.bf16.mxu0 0
        %1339 = vmatpush1.bf16.msra.mxu0 0
        %1340 = vmatprep.subr.bf16.mxu0 0
        %1341 = vmatpush1.bf16.msra.mxu0 0
        %1342 = vmatprep.subr.bf16.mxu0 0
        %1343 = vmatpush1.bf16.msra.mxu0 0
        %1344 = vmatprep.subr.bf16.mxu0 0
        %1345 = vmatpush1.bf16.msra.mxu0 0
        %1346 = vmatprep.subr.bf16.mxu0 0
        %1347 = vmatpush1.bf16.msra.mxu0 0
        %1348 = vmatprep.subr.bf16.mxu0 0
        %1349 = vmatpush1.bf16.msra.mxu0 0
        %1350 = vmatprep.subr.bf16.mxu0 0
        %1351 = vmatpush1.bf16.msra.mxu0 0
        %1352 = vmatprep.subr.bf16.mxu0 0
        %1353 = vmatpush1.bf16.msra.mxu0 0
        %1354 = vmatprep.subr.bf16.mxu0 0
        %1355 = vmatpush1.bf16.msra.mxu0 0
        %1356 = vmatprep.mubr.bf16.mxu0 0
        %1357 = vmatmul.mubr.bf16.gmra.mrb[0].mxu0 %v1281
        %v1358 = vpop.f32.mrb[0].mxu0
        %v1359 = vadd.f32 %v501, %v1358
        %v1360 = vpop.f32.mrb[0].mxu0
        %v1361 = vpop.f32.mrb[0].mxu0
        %v1362 = vpop.f32.mrb[0].mxu0
        %1363 = vdwg.mxu0
        %v1364 = vadd.f32 %v411, %v1318
        %v1365 = vadd.f32 %v413, %v1320
        %v1366 = vxor.u32 %v1364, 2147483648
        %v1367 = vxor.u32 %v1365, 2147483648
        %v1368 = vmul.f32 %v1366, 1.442695
        %v1369 = vpow.pop %v1368
        %v1370 = vmul.f32 %v1367, 1.442695
        %v1371 = vpow.pop %v1370
        %v1372 = vadd.f32 %v1369, 1.0
        %v1373 = vadd.f32 %v1371, 1.0
        %v1374 = vrcp.pop %v1372
        %v1375 = vmul.f32 1.0, %v1374
        %v1376 = vrcp.pop %v1373
        %v1377 = vmul.f32 1.0, %v1376
        %v1378 = vmul.f32 %v1375, %v1359
        %v1379 = vadd.f32 %v477, %v1378
        %v1380 = vtanh.pop %v1379
        %v1381 = vsub.f32 1.0, %v1377
        %v1382 = vmul.f32 %v1381, %v1380
        %v1383 = vmul.f32 %v1377, %v1278
        %v1384 = vadd.f32 %v1382, %v1383
        %v1385 = vld [vmem:[%s5] sm:$0xff]
        %v1386 = vld [vmem:[%s5 + $0x8] sm:$0xff]
        %v1387 = vld [vmem:[%s5 + $0x10] sm:$0xff]
        %v1388 = vld [vmem:[%s5 + $0x18] sm:$0xff]
        %v1389 = vld [vmem:[%s6] sm:$0x1]
        %v1391 = vlaneseq
        %v1392 = vshrl.u32 %v1391, 7
        %v1393 = vsub.s32 0, %v1392
        %v1394 = vrot.slane %v1389, %v1393
        %v1397 = vsel %vm537, %v1384, 0
        %1399 = vmatprep.subr.mxu0 0.0
        %1400 = vmatpush1.msra.mxu0 %v1385
        %1401 = vmatprep.subr.mxu0 0.0
        %1402 = vmatpush1.msra.mxu0 %v1386
        %1403 = vmatprep.subr.mxu0 0.0
        %1404 = vmatpush1.msra.mxu0 %v1387
        %1405 = vmatprep.subr.mxu0 0.0
        %1406 = vmatpush1.msra.mxu0 %v1388
        %1407 = vmatprep.subr.mxu0 0.0
        %1408 = vmatpush1.msra.mxu0 0.0
        %1409 = vmatprep.subr.mxu0 0.0
        %1410 = vmatpush1.msra.mxu0 0.0
        %1411 = vmatprep.subr.mxu0 0.0
        %1412 = vmatpush1.msra.mxu0 0.0
        %1413 = vmatprep.subr.mxu0 0.0
        %1414 = vmatpush1.msra.mxu0 0.0
        %1415 = vmatprep.subr.mxu0 0.0
        %1416 = vmatpush1.msra.mxu0 0.0
        %1417 = vmatprep.subr.mxu0 0.0
        %1418 = vmatpush1.msra.mxu0 0.0
        %1419 = vmatprep.subr.mxu0 0.0
        %1420 = vmatpush1.msra.mxu0 0.0
        %1421 = vmatprep.subr.mxu0 0.0
        %1422 = vmatpush1.msra.mxu0 0.0
        %1423 = vmatprep.subr.mxu0 0.0
        %1424 = vmatpush1.msra.mxu0 0.0
        %1425 = vmatprep.subr.mxu0 0.0
        %1426 = vmatpush1.msra.mxu0 0.0
        %1427 = vmatprep.subr.mxu0 0.0
        %1428 = vmatpush1.msra.mxu0 0.0
        %1429 = vmatprep.subr.mxu0 0.0
        %1430 = vmatpush1.msra.mxu0 0.0
        %1431 = vmatprep.subr.mxu0 0.0
        %1432 = vmatpush1.msra.mxu0 0.0
        %1433 = vmatprep.subr.mxu0 0.0
        %1434 = vmatpush1.msra.mxu0 0.0
        %1435 = vmatprep.subr.mxu0 0.0
        %1436 = vmatpush1.msra.mxu0 0.0
        %1437 = vmatprep.subr.mxu0 0.0
        %1438 = vmatpush1.msra.mxu0 0.0
        %1439 = vmatprep.subr.mxu0 0.0
        %1440 = vmatpush1.msra.mxu0 0.0
        %1441 = vmatprep.subr.mxu0 0.0
        %1442 = vmatpush1.msra.mxu0 0.0
        %1443 = vmatprep.subr.mxu0 0.0
        %1444 = vmatpush1.msra.mxu0 0.0
        %1445 = vmatprep.subr.mxu0 0.0
        %1446 = vmatpush1.msra.mxu0 0.0
        %1447 = vmatprep.subr.mxu0 0.0
        %1448 = vmatpush1.msra.mxu0 0.0
        %1449 = vmatprep.subr.mxu0 0.0
        %1450 = vmatpush1.msra.mxu0 0.0
        %1451 = vmatprep.subr.mxu0 0.0
        %1452 = vmatpush1.msra.mxu0 0.0
        %1453 = vmatprep.subr.mxu0 0.0
        %1454 = vmatpush1.msra.mxu0 0.0
        %1455 = vmatprep.subr.mxu0 0.0
        %1456 = vmatpush1.msra.mxu0 0.0
        %1457 = vmatprep.subr.mxu0 0.0
        %1458 = vmatpush1.msra.mxu0 0.0
        %1459 = vmatprep.subr.mxu0 0.0
        %1460 = vmatpush1.msra.mxu0 0.0
        %1461 = vmatprep.subr.mxu0 0.0
        %1462 = vmatpush1.msra.mxu0 0.0
        %1463 = vmatprep.mubr.f32.mxu0 0.0
        %1464 = vmatmul.mubr.f32.gmra.mrb[0].mxu0 %v1397
        %v1465 = vpop.f32.mrb[0].mxu0
        %v1466 = vadd.f32 %v1394, %v1465
        %v1467 = vpop.f32.mrb[0].mxu0
        %1468 = vdwg.mxu0
        %1469 = vst [vmem:[%s272] sm:$0xff] %v1466
        %s1470 = sand.u32 %s181, 1
        %s1471 = scalar_lea.sflag [#allocation3], %s1470
        %s1472 = sand.u32 %s181, 1
        %s1473 = smul.addr %s1472, 8
        %s1474 = scalar_lea.vmem [#allocation2], %s1473
        // Predicated region
        $region49: #{tpu_custom_call.1} parent=47 // pred_check
          %p1475 = pneg %p191
        $region50: #{tpu_custom_call.1} parent=47 // pred_check_branch
          %1477 = sbr.rel (%p1475) target = $region52
        $region51: #{tpu_custom_call.1} parent=47 // pred_region
          %s1479 = ssub.s32 128, 128
          %1480 = vsyncadd %s1471, %s1479
          %s1481 = smul.addr %s21, 128
          %s1482 = scalar_lea.hbm %s7, %s1481
          %s1484 = sshll.u32 %s1474, 4
          %s1485 = int_to_ptr.vmem [resolvable:$true] %s1484
          %1487 = dma.vmem_to_hbm [thread:$0]  %s1485, 128, %s1482, %s1471
        $region52: #{tpu_custom_call.1} parent=47 // pred_fallthru
          _
      $region48: #{tpu_custom_call.1} parent=5 // pred_fallthru
        _
      %p1488 = scmp.le.s32.totalorder 2, %s16
      // Predicated region
      $region53: #{tpu_custom_call.1} parent=5 // pred_check
        %p1489 = pneg %p1488
      $region54: #{tpu_custom_call.1} parent=5 // pred_check_branch
        %1491 = sbr.rel (%p1489) target = $region56
      $region55: #{tpu_custom_call.1} parent=5 // pred_region
        %s1492 = ssub.s32 %s16, 2
        // Predicated region
        $region57: #{tpu_custom_call.1} parent=55 // pred_check
          %p1493 = pneg %p197
        $region58: #{tpu_custom_call.1} parent=55 // pred_check_branch
          %1495 = sbr.rel (%p1493) target = $region60
        $region59: #{tpu_custom_call.1} parent=55 // pred_region
          %s1496 = sand.u32 %s182, 1
          %s1497 = scalar_lea.sflag [#allocation3], %s1496
          %s1498 = sand.u32 %s182, 1
          %s1499 = smul.addr %s1498, 8
          %s1500 = scalar_lea.vmem [#allocation2], %s1499
          %1501 = dma.done %s1497, 128
        $region60: #{tpu_custom_call.1} parent=55 // pred_fallthru
          _
      $region56: #{tpu_custom_call.1} parent=5 // pred_fallthru
        _
    $region6: #{tpu_custom_call.1} parent=1 // loop_footer
      %s20 = sadd.s32 1, %s16
    $region7: #{tpu_custom_call.1} parent=1 // loop_footer_branch
      %15 = sbr.rel target = $region3
    $region8: #{tpu_custom_call.1} parent=1 // loop_exit
      _
    %1502 = vsyncpa [#allocation3], 1
    %s1503 = scalar_lea.sflag [#allocation3], 1
    %1504 = vsyncpa %s1503, 1

</llo_original>
